<compile_context>
chip_gen: v6e
topology: v6e:2x2x1
jax: 0.10.0
libtpu: 0.0.40
codegen_flags: <defaults>
</compile_context>

<pallas_src>
import math

import jax
import jax.numpy as jnp
from jax import lax
from jax.experimental import pallas as pl
from jax.experimental.pallas import tpu as pltpu


def _make_kernel(C, NH, T, offs):
    """Fused QKV-conv + attention + unify + ReLU kernel (one spatial chunk)."""
    CNH = C * NH

    def kernel(xmain_ref, xhalo_ref, wqkv_ref, wu_ref, o_ref):
        # xmain_ref: (1, C, T)     bf16  current flat spatial chunk (padded coords)
        # xhalo_ref: (1, C, HALO)  bf16  first HALO elements after the chunk
        # wqkv_ref : (3*CNH, 9*C)  bf16  fused Q|K|V 3x3 weights, tap-major cols
        # wu_ref   : (C, CNH)      bf16  1x1 unify weights, head-major cols
        # o_ref    : (1, C, T)     f32
        ext = jnp.concatenate([xmain_ref[0], xhalo_ref[0]], axis=-1)  # (C, T+HALO)

        # In-kernel im2col: 9 lane-shifted views of the flat padded image.
        # Row order = tap-major / channel-minor, matching the wrapper's
        # weight-column permutation.
        xcol = jnp.concatenate([ext[:, off:off + T] for off in offs],
                               axis=0)                                # (9C, T)

        # Fused Q/K/V 3x3 convolution: a single bf16 MXU matmul, f32 accum.
        qkv = jnp.dot(wqkv_ref[...], xcol,
                      preferred_element_type=jnp.float32)             # (3CNH, T)
        qc = qkv[0:CNH]
        kc = qkv[CNH:2 * CNH]
        vc = qkv[2 * CNH:3 * CNH]

        # scores[k, q, t] = sum_head K[head*C+k, t] * Q[head*C+q, t]
        # (1/sqrt(C*NH) already folded into the Q weights).  k is the LEADING
        # axis so all softmax reductions below are elementwise across vreg
        # groups (VPU) rather than 4-of-8-sublane XLU reduces.
        scores = jnp.zeros((C, C, T), jnp.float32)
        for h in range(NH):                                            # static unroll
            kh = kc[h * C:(h + 1) * C]                                 # (C, T)
            qh = qc[h * C:(h + 1) * C]                                 # (C, T)
            scores = scores + kh[:, None, :] * qh[None, :, :]

        # Softmax over k (axis 0); EUP reciprocal, VPU multiplies.
        m = jnp.max(scores, axis=0)                                    # (C, T)
        e = jnp.exp(scores - m[None, :, :])                            # (C, C, T)
        ssum = jnp.sum(e, axis=0)                                      # (C, T)
        inv = pl.reciprocal(ssum, approx=True)                         # (C, T)
        w = e * inv[None, :, :]                                        # (C, C, T)

        # attended[head*C + q, t] = sum_k w[k, q, t] * V[head*C + k, t]
        att = []
        for h in range(NH):
            vh = vc[h * C:(h + 1) * C]                                 # (C, T)
            att.append(jnp.sum(w * vh[:, None, :], axis=0))            # (C, T)
        attended = jnp.concatenate(att, axis=0)                        # (CNH, T) head-major

        # 1x1 unify-heads conv (bf16 MXU, f32 accum) + ReLU, lane-dense store.
        out = jnp.dot(wu_ref[...], attended.astype(jnp.bfloat16),
                      preferred_element_type=jnp.float32)              # (C, T)
        o_ref[0] = jnp.maximum(out, 0.0).astype(o_ref.dtype)

    return kernel


def _choose_tile(needed, halo, bytes_per_pos, n_batch,
                 budget_bytes=12 * 1024 * 1024, min_steps=8):
    """Largest halo-multiple spatial chunk under a VMEM budget, shrunk (when
    possible) so there are a few grid steps per TensorCore."""
    t = max(halo, (budget_bytes // (bytes_per_pos * halo)) * halo)
    t = min(t, pl.cdiv(needed, halo) * halo)
    while t > halo and n_batch * pl.cdiv(needed, t) < min_steps:
        t = max(halo, (t // (2 * halo)) * halo)
    return t


def self_attention_forward(x, wq, wk, wv, wu, *, num_heads):
    """x: (N, C, H, W); wq/wk/wv: (C*NH, C, 3, 3); wu: (C, C*NH, 1, 1)."""
    N, C, H, W = x.shape
    NH = num_heads
    CNH = C * NH
    Hp, Wp = H + 2, W + 2
    scale = 1.0 / math.sqrt(CNH)

    # ---- weight prep (once, outside the kernel) ---------------------------
    # 3x3 weights -> (CNH, 9C) with tap-major columns (col = (dy*3+dx)*C + c),
    # matching the kernel's im2col row order; scale folded into Wq.
    def prep3(wgt, s=1.0):
        return wgt.reshape(CNH, C, 9).transpose(0, 2, 1).reshape(CNH, 9 * C) * s

    wqkv = jnp.concatenate([prep3(wq, scale), prep3(wk), prep3(wv)], axis=0)
    wqkv = wqkv.astype(jnp.bfloat16)                                   # (3CNH, 9C)
    # Unify weights: permute columns from torch's q*NH+head interleave to
    # head-major head*C+q so the kernel builds `attended` block-contiguously.
    wu_hm = (wu.reshape(C, C, NH).transpose(0, 2, 1)
             .reshape(C, CNH).astype(jnp.bfloat16))                    # (C, CNH)

    # ---- input prep: zero-pad, flatten padded spatial onto the lane axis --
    xp = jnp.pad(x, ((0, 0), (0, 0), (1, 1), (1, 1)))                  # (N, C, Hp, Wp)
    xflat = xp.reshape(N, C, Hp * Wp).astype(jnp.bfloat16)

    needed = H * Wp                        # all valid output anchors < H*Wp
    HALO = pl.cdiv(2 * Wp + 2, 128) * 128  # halo each chunk needs past its end
    bytes_per_pos = (4 * C                 # input chunk bf16, double buffered
                     + 2 * 10 * C          # ext + xcol bf16
                     + 4 * 3 * CNH         # q/k/v f32
                     + 4 * 3 * C * C       # scores / exp / weights f32
                     + 6 * CNH             # attended f32 + bf16 copy
                     + 8 * C)              # output chunk f32, double buffered
    T = _choose_tile(needed, HALO, bytes_per_pos, N)
    R = pl.cdiv(needed, T)
    L = (R + 1) * T                        # extra zero chunk backs the last halo
    xflat = jnp.pad(xflat, ((0, 0), (0, 0), (0, L - Hp * Wp)))

    offs = tuple(dy * Wp + dx for dy in range(3) for dx in range(3))
    halo_blocks = T // HALO

    out_flat = pl.pallas_call(
        _make_kernel(C, NH, T, offs),
        out_shape=jax.ShapeDtypeStruct((N, C, R * T), x.dtype),
        grid_spec=pltpu.PrefetchScalarGridSpec(
            num_scalar_prefetch=0,
            grid=(N, R),
            in_specs=[
                pl.BlockSpec((1, C, T), lambda b, r: (b, 0, r)),          # chunk
                pl.BlockSpec((1, C, HALO),
                             lambda b, r: (b, 0, (r + 1) * halo_blocks)), # halo
                pl.BlockSpec((3 * CNH, 9 * C), lambda b, r: (0, 0)),      # Wqkv
                pl.BlockSpec((C, CNH), lambda b, r: (0, 0)),              # Wu
            ],
            out_specs=pl.BlockSpec((1, C, T), lambda b, r: (b, 0, r)),
        ),
        compiler_params=pltpu.CompilerParams(
            dimension_semantics=("parallel", "parallel"),
            vmem_limit_bytes=32 * 1024 * 1024),
    )(xflat, xflat, wqkv, wu_hm)

    # Valid anchors are p = h*Wp + w with h < H, w < W: drop the padded columns.
    out = out_flat[:, :, :H * Wp].reshape(N, C, H, Wp)[:, :, :, :W]
    return out


def _reference(x, wq, wk, wv, wu, *, num_heads):
    """Pure-JAX f32 reference mirroring the PyTorch forward exactly."""
    N, C, H, W = x.shape
    NH = num_heads
    dn = ('NCHW', 'OIHW', 'NCHW')

    def conv3(inp, wgt):
        return lax.conv_general_dilated(
            inp, wgt, window_strides=(1, 1), padding=((1, 1), (1, 1)),
            dimension_numbers=dn)

    q = conv3(x, wq).reshape(N, NH, C, H, W).transpose(0, 2, 1, 3, 4)
    k = conv3(x, wk).reshape(N, NH, C, H, W).transpose(0, 2, 1, 3, 4)
    v = conv3(x, wv).reshape(N, NH, C, H, W).transpose(0, 2, 1, 3, 4)
    scores = jnp.einsum('bqchw,bkchw->bqhwk', q, k) / math.sqrt(C * NH)
    w_att = jax.nn.softmax(scores, axis=-1)
    att = jnp.einsum('bqhwk,bkchw->bqchw', w_att, v)           # (N, C, NH, H, W)
    att_flat = att.reshape(N, C * NH, H, W)
    out = jnp.einsum('oi,bihw->bohw', wu.reshape(C, C * NH), att_flat)
    return jnp.maximum(out, 0.0)


if __name__ == "__main__":
    key = jax.random.PRNGKey(0)
    kx, kq, kk, kv, ku = jax.random.split(key, 5)

    N, C, H, W, NH = 2, 4, 16, 16, 8

    x = jax.random.normal(kx, (N, C, H, W), dtype=jnp.float32)
    # Deterministic params (roughly PyTorch kaiming-uniform scale).
    b_qkv = 1.0 / math.sqrt(C * 3 * 3)
    wq = jax.random.uniform(kq, (C * NH, C, 3, 3), jnp.float32, -b_qkv, b_qkv)
    wk = jax.random.uniform(kk, (C * NH, C, 3, 3), jnp.float32, -b_qkv, b_qkv)
    wv = jax.random.uniform(kv, (C * NH, C, 3, 3), jnp.float32, -b_qkv, b_qkv)
    b_u = 1.0 / math.sqrt(C * NH)
    wu = jax.random.uniform(ku, (C, C * NH, 1, 1), jnp.float32, -b_u, b_u)

    out = self_attention_forward(x, wq, wk, wv, wu, num_heads=NH)
    out = jax.block_until_ready(out)

    ref = _reference(x, wq, wk, wv, wu, num_heads=NH)
    assert out.shape == (N, C, H, W)
    max_err = jnp.max(jnp.abs(out - ref))
    # bf16 MXU operands + approx reciprocal => looser tolerance than pure f32.
    assert jnp.allclose(out, ref, atol=5e-2, rtol=5e-2), f"max abs err {max_err}"

    print("KERNEL_OK")
</pallas_src>

<mosaic_0001>
module attributes {stable_mosaic.version = 11 : i64} {
  func.func @kernel(%arg0: i32, %arg1: i32, %arg2: memref<1x4x128xbf16, #tpu.memory_space<vmem>>, %arg3: memref<1x4x128xbf16, #tpu.memory_space<vmem>>, %arg4: memref<96x36xbf16, #tpu.memory_space<vmem>>, %arg5: memref<4x32xbf16, #tpu.memory_space<vmem>>, %arg6: memref<1x4x128xf32, #tpu.memory_space<vmem>>) attributes {dimension_semantics = [#tpu.dimension_semantics<parallel>, #tpu.dimension_semantics<parallel>], iteration_bounds = array<i64: 2, 3>, scalar_prefetch = 0 : i64, scratch_operands = 0 : i64, tpu.core_type = #tpu.core_type<tc>, window_params = [{transform_indices = @transform_0, window_bounds = array<i64: 1, 4, 128>}, {transform_indices = @transform_1, window_bounds = array<i64: 1, 4, 128>}, {pipeline_mode = #tpu.pipeline_mode<synchronous>, transform_indices = @transform_2, window_bounds = array<i64: 96, 36>}, {pipeline_mode = #tpu.pipeline_mode<synchronous>, transform_indices = @transform_3, window_bounds = array<i64: 4, 32>}, {transform_indices = @transform_4, window_bounds = array<i64: 1, 4, 128>}]} {
    %c0 = arith.constant 0 : index
    %c0_0 = arith.constant 0 : index
    %c0_1 = arith.constant 0 : index
    %0 = vector.load %arg2[%c0, %c0_0, %c0_1] : memref<1x4x128xbf16, #tpu.memory_space<vmem>>, vector<1x4x128xbf16>
    %1 = vector.shape_cast %0 : vector<1x4x128xbf16> to vector<4x128xbf16>
    %c0_2 = arith.constant 0 : index
    %c0_3 = arith.constant 0 : index
    %c0_4 = arith.constant 0 : index
    %2 = vector.load %arg3[%c0_2, %c0_3, %c0_4] : memref<1x4x128xbf16, #tpu.memory_space<vmem>>, vector<1x4x128xbf16>
    %3 = vector.shape_cast %2 : vector<1x4x128xbf16> to vector<4x128xbf16>
    %4 = tpu.concatenate %1, %3 in 1 : vector<4x128xbf16>, vector<4x128xbf16> -> vector<4x256xbf16>
    %5 = vector.extract_strided_slice %4 {offsets = [0, 0], sizes = [4, 128], strides = [1, 1]} : vector<4x256xbf16> to vector<4x128xbf16>
    %6 = vector.extract_strided_slice %4 {offsets = [0, 1], sizes = [4, 128], strides = [1, 1]} : vector<4x256xbf16> to vector<4x128xbf16>
    %7 = vector.extract_strided_slice %4 {offsets = [0, 2], sizes = [4, 128], strides = [1, 1]} : vector<4x256xbf16> to vector<4x128xbf16>
    %8 = vector.extract_strided_slice %4 {offsets = [0, 18], sizes = [4, 128], strides = [1, 1]} : vector<4x256xbf16> to vector<4x128xbf16>
    %9 = vector.extract_strided_slice %4 {offsets = [0, 19], sizes = [4, 128], strides = [1, 1]} : vector<4x256xbf16> to vector<4x128xbf16>
    %10 = vector.extract_strided_slice %4 {offsets = [0, 20], sizes = [4, 128], strides = [1, 1]} : vector<4x256xbf16> to vector<4x128xbf16>
    %11 = vector.extract_strided_slice %4 {offsets = [0, 36], sizes = [4, 128], strides = [1, 1]} : vector<4x256xbf16> to vector<4x128xbf16>
    %12 = vector.extract_strided_slice %4 {offsets = [0, 37], sizes = [4, 128], strides = [1, 1]} : vector<4x256xbf16> to vector<4x128xbf16>
    %13 = vector.extract_strided_slice %4 {offsets = [0, 38], sizes = [4, 128], strides = [1, 1]} : vector<4x256xbf16> to vector<4x128xbf16>
    %14 = tpu.concatenate %5, %6, %7, %8, %9, %10, %11, %12, %13 in 0 : vector<4x128xbf16>, vector<4x128xbf16>, vector<4x128xbf16>, vector<4x128xbf16>, vector<4x128xbf16>, vector<4x128xbf16>, vector<4x128xbf16>, vector<4x128xbf16>, vector<4x128xbf16> -> vector<36x128xbf16>
    %c0_5 = arith.constant 0 : index
    %c0_6 = arith.constant 0 : index
    %15 = vector.load %arg4[%c0_5, %c0_6] : memref<96x36xbf16, #tpu.memory_space<vmem>>, vector<96x36xbf16>
    %cst = arith.constant dense<0.000000e+00> : vector<96x128xf32>
    %16 = tpu.matmul %15, %14, %cst {dimension_numbers = #tpu.dot_dimension_numbers<[1], [0], [0], [1], [0, 0, 1, 1], [], []>} : vector<96x36xbf16>, vector<36x128xbf16>, vector<96x128xf32> -> vector<96x128xf32>
    %17 = vector.extract_strided_slice %16 {offsets = [0, 0], sizes = [32, 128], strides = [1, 1]} : vector<96x128xf32> to vector<32x128xf32>
    %18 = vector.extract_strided_slice %16 {offsets = [32, 0], sizes = [32, 128], strides = [1, 1]} : vector<96x128xf32> to vector<32x128xf32>
    %19 = vector.extract_strided_slice %16 {offsets = [64, 0], sizes = [32, 128], strides = [1, 1]} : vector<96x128xf32> to vector<32x128xf32>
    %cst_7 = arith.constant 0.000000e+00 : f32
    %20 = vector.broadcast %cst_7 : f32 to vector<4x4x128xf32>
    %21 = vector.extract_strided_slice %18 {offsets = [0, 0], sizes = [4, 128], strides = [1, 1]} : vector<32x128xf32> to vector<4x128xf32>
    %22 = vector.extract_strided_slice %17 {offsets = [0, 0], sizes = [4, 128], strides = [1, 1]} : vector<32x128xf32> to vector<4x128xf32>
    %23 = vector.shape_cast %21 : vector<4x128xf32> to vector<4x1x128xf32>
    %24 = vector.shape_cast %22 : vector<4x128xf32> to vector<1x4x128xf32>
    %25 = vector.broadcast %23 : vector<4x1x128xf32> to vector<4x4x128xf32>
    %26 = vector.broadcast %24 : vector<1x4x128xf32> to vector<4x4x128xf32>
    %27 = arith.mulf %25, %26 : vector<4x4x128xf32>
    %28 = arith.addf %20, %27 : vector<4x4x128xf32>
    %29 = vector.extract_strided_slice %18 {offsets = [4, 0], sizes = [4, 128], strides = [1, 1]} : vector<32x128xf32> to vector<4x128xf32>
    %30 = vector.extract_strided_slice %17 {offsets = [4, 0], sizes = [4, 128], strides = [1, 1]} : vector<32x128xf32> to vector<4x128xf32>
    %31 = vector.shape_cast %29 : vector<4x128xf32> to vector<4x1x128xf32>
    %32 = vector.shape_cast %30 : vector<4x128xf32> to vector<1x4x128xf32>
    %33 = vector.broadcast %31 : vector<4x1x128xf32> to vector<4x4x128xf32>
    %34 = vector.broadcast %32 : vector<1x4x128xf32> to vector<4x4x128xf32>
    %35 = arith.mulf %33, %34 : vector<4x4x128xf32>
    %36 = arith.addf %28, %35 : vector<4x4x128xf32>
    %37 = vector.extract_strided_slice %18 {offsets = [8, 0], sizes = [4, 128], strides = [1, 1]} : vector<32x128xf32> to vector<4x128xf32>
    %38 = vector.extract_strided_slice %17 {offsets = [8, 0], sizes = [4, 128], strides = [1, 1]} : vector<32x128xf32> to vector<4x128xf32>
    %39 = vector.shape_cast %37 : vector<4x128xf32> to vector<4x1x128xf32>
    %40 = vector.shape_cast %38 : vector<4x128xf32> to vector<1x4x128xf32>
    %41 = vector.broadcast %39 : vector<4x1x128xf32> to vector<4x4x128xf32>
    %42 = vector.broadcast %40 : vector<1x4x128xf32> to vector<4x4x128xf32>
    %43 = arith.mulf %41, %42 : vector<4x4x128xf32>
    %44 = arith.addf %36, %43 : vector<4x4x128xf32>
    %45 = vector.extract_strided_slice %18 {offsets = [12, 0], sizes = [4, 128], strides = [1, 1]} : vector<32x128xf32> to vector<4x128xf32>
    %46 = vector.extract_strided_slice %17 {offsets = [12, 0], sizes = [4, 128], strides = [1, 1]} : vector<32x128xf32> to vector<4x128xf32>
    %47 = vector.shape_cast %45 : vector<4x128xf32> to vector<4x1x128xf32>
    %48 = vector.shape_cast %46 : vector<4x128xf32> to vector<1x4x128xf32>
    %49 = vector.broadcast %47 : vector<4x1x128xf32> to vector<4x4x128xf32>
    %50 = vector.broadcast %48 : vector<1x4x128xf32> to vector<4x4x128xf32>
    %51 = arith.mulf %49, %50 : vector<4x4x128xf32>
    %52 = arith.addf %44, %51 : vector<4x4x128xf32>
    %53 = vector.extract_strided_slice %18 {offsets = [16, 0], sizes = [4, 128], strides = [1, 1]} : vector<32x128xf32> to vector<4x128xf32>
    %54 = vector.extract_strided_slice %17 {offsets = [16, 0], sizes = [4, 128], strides = [1, 1]} : vector<32x128xf32> to vector<4x128xf32>
    %55 = vector.shape_cast %53 : vector<4x128xf32> to vector<4x1x128xf32>
    %56 = vector.shape_cast %54 : vector<4x128xf32> to vector<1x4x128xf32>
    %57 = vector.broadcast %55 : vector<4x1x128xf32> to vector<4x4x128xf32>
    %58 = vector.broadcast %56 : vector<1x4x128xf32> to vector<4x4x128xf32>
    %59 = arith.mulf %57, %58 : vector<4x4x128xf32>
    %60 = arith.addf %52, %59 : vector<4x4x128xf32>
    %61 = vector.extract_strided_slice %18 {offsets = [20, 0], sizes = [4, 128], strides = [1, 1]} : vector<32x128xf32> to vector<4x128xf32>
    %62 = vector.extract_strided_slice %17 {offsets = [20, 0], sizes = [4, 128], strides = [1, 1]} : vector<32x128xf32> to vector<4x128xf32>
    %63 = vector.shape_cast %61 : vector<4x128xf32> to vector<4x1x128xf32>
    %64 = vector.shape_cast %62 : vector<4x128xf32> to vector<1x4x128xf32>
    %65 = vector.broadcast %63 : vector<4x1x128xf32> to vector<4x4x128xf32>
    %66 = vector.broadcast %64 : vector<1x4x128xf32> to vector<4x4x128xf32>
    %67 = arith.mulf %65, %66 : vector<4x4x128xf32>
    %68 = arith.addf %60, %67 : vector<4x4x128xf32>
    %69 = vector.extract_strided_slice %18 {offsets = [24, 0], sizes = [4, 128], strides = [1, 1]} : vector<32x128xf32> to vector<4x128xf32>
    %70 = vector.extract_strided_slice %17 {offsets = [24, 0], sizes = [4, 128], strides = [1, 1]} : vector<32x128xf32> to vector<4x128xf32>
    %71 = vector.shape_cast %69 : vector<4x128xf32> to vector<4x1x128xf32>
    %72 = vector.shape_cast %70 : vector<4x128xf32> to vector<1x4x128xf32>
    %73 = vector.broadcast %71 : vector<4x1x128xf32> to vector<4x4x128xf32>
    %74 = vector.broadcast %72 : vector<1x4x128xf32> to vector<4x4x128xf32>
    %75 = arith.mulf %73, %74 : vector<4x4x128xf32>
    %76 = arith.addf %68, %75 : vector<4x4x128xf32>
    %77 = vector.extract_strided_slice %18 {offsets = [28, 0], sizes = [4, 128], strides = [1, 1]} : vector<32x128xf32> to vector<4x128xf32>
    %78 = vector.extract_strided_slice %17 {offsets = [28, 0], sizes = [4, 128], strides = [1, 1]} : vector<32x128xf32> to vector<4x128xf32>
    %79 = vector.shape_cast %77 : vector<4x128xf32> to vector<4x1x128xf32>
    %80 = vector.shape_cast %78 : vector<4x128xf32> to vector<1x4x128xf32>
    %81 = vector.broadcast %79 : vector<4x1x128xf32> to vector<4x4x128xf32>
    %82 = vector.broadcast %80 : vector<1x4x128xf32> to vector<4x4x128xf32>
    %83 = arith.mulf %81, %82 : vector<4x4x128xf32>
    %84 = arith.addf %76, %83 : vector<4x4x128xf32>
    %cst_8 = arith.constant dense<0xFF800000> : vector<4x128xf32>
    %85 = vector.multi_reduction <maximumf>, %84, %cst_8 [0] : vector<4x4x128xf32> to vector<4x128xf32>
    %86 = vector.shape_cast %85 : vector<4x128xf32> to vector<1x4x128xf32>
    %87 = vector.broadcast %86 : vector<1x4x128xf32> to vector<4x4x128xf32>
    %88 = arith.subf %84, %87 : vector<4x4x128xf32>
    %89 = math.exp %88 : vector<4x4x128xf32>
    %cst_9 = arith.constant dense<0.000000e+00> : vector<4x128xf32>
    %90 = vector.multi_reduction <add>, %89, %cst_9 [0] : vector<4x4x128xf32> to vector<4x128xf32>
    %91 = tpu.reciprocal %90 {approx = true} : vector<4x128xf32> -> vector<4x128xf32>
    %92 = vector.shape_cast %91 : vector<4x128xf32> to vector<1x4x128xf32>
    %93 = vector.broadcast %92 : vector<1x4x128xf32> to vector<4x4x128xf32>
    %94 = arith.mulf %89, %93 : vector<4x4x128xf32>
    %95 = vector.extract_strided_slice %19 {offsets = [0, 0], sizes = [4, 128], strides = [1, 1]} : vector<32x128xf32> to vector<4x128xf32>
    %96 = vector.shape_cast %95 : vector<4x128xf32> to vector<4x1x128xf32>
    %97 = vector.broadcast %96 : vector<4x1x128xf32> to vector<4x4x128xf32>
    %98 = arith.mulf %94, %97 : vector<4x4x128xf32>
    %cst_10 = arith.constant dense<0.000000e+00> : vector<4x128xf32>
    %99 = vector.multi_reduction <add>, %98, %cst_10 [0] : vector<4x4x128xf32> to vector<4x128xf32>
    %100 = vector.extract_strided_slice %19 {offsets = [4, 0], sizes = [4, 128], strides = [1, 1]} : vector<32x128xf32> to vector<4x128xf32>
    %101 = vector.shape_cast %100 : vector<4x128xf32> to vector<4x1x128xf32>
    %102 = vector.broadcast %101 : vector<4x1x128xf32> to vector<4x4x128xf32>
    %103 = arith.mulf %94, %102 : vector<4x4x128xf32>
    %cst_11 = arith.constant dense<0.000000e+00> : vector<4x128xf32>
    %104 = vector.multi_reduction <add>, %103, %cst_11 [0] : vector<4x4x128xf32> to vector<4x128xf32>
    %105 = vector.extract_strided_slice %19 {offsets = [8, 0], sizes = [4, 128], strides = [1, 1]} : vector<32x128xf32> to vector<4x128xf32>
    %106 = vector.shape_cast %105 : vector<4x128xf32> to vector<4x1x128xf32>
    %107 = vector.broadcast %106 : vector<4x1x128xf32> to vector<4x4x128xf32>
    %108 = arith.mulf %94, %107 : vector<4x4x128xf32>
    %cst_12 = arith.constant dense<0.000000e+00> : vector<4x128xf32>
    %109 = vector.multi_reduction <add>, %108, %cst_12 [0] : vector<4x4x128xf32> to vector<4x128xf32>
    %110 = vector.extract_strided_slice %19 {offsets = [12, 0], sizes = [4, 128], strides = [1, 1]} : vector<32x128xf32> to vector<4x128xf32>
    %111 = vector.shape_cast %110 : vector<4x128xf32> to vector<4x1x128xf32>
    %112 = vector.broadcast %111 : vector<4x1x128xf32> to vector<4x4x128xf32>
    %113 = arith.mulf %94, %112 : vector<4x4x128xf32>
    %cst_13 = arith.constant dense<0.000000e+00> : vector<4x128xf32>
    %114 = vector.multi_reduction <add>, %113, %cst_13 [0] : vector<4x4x128xf32> to vector<4x128xf32>
    %115 = vector.extract_strided_slice %19 {offsets = [16, 0], sizes = [4, 128], strides = [1, 1]} : vector<32x128xf32> to vector<4x128xf32>
    %116 = vector.shape_cast %115 : vector<4x128xf32> to vector<4x1x128xf32>
    %117 = vector.broadcast %116 : vector<4x1x128xf32> to vector<4x4x128xf32>
    %118 = arith.mulf %94, %117 : vector<4x4x128xf32>
    %cst_14 = arith.constant dense<0.000000e+00> : vector<4x128xf32>
    %119 = vector.multi_reduction <add>, %118, %cst_14 [0] : vector<4x4x128xf32> to vector<4x128xf32>
    %120 = vector.extract_strided_slice %19 {offsets = [20, 0], sizes = [4, 128], strides = [1, 1]} : vector<32x128xf32> to vector<4x128xf32>
    %121 = vector.shape_cast %120 : vector<4x128xf32> to vector<4x1x128xf32>
    %122 = vector.broadcast %121 : vector<4x1x128xf32> to vector<4x4x128xf32>
    %123 = arith.mulf %94, %122 : vector<4x4x128xf32>
    %cst_15 = arith.constant dense<0.000000e+00> : vector<4x128xf32>
    %124 = vector.multi_reduction <add>, %123, %cst_15 [0] : vector<4x4x128xf32> to vector<4x128xf32>
    %125 = vector.extract_strided_slice %19 {offsets = [24, 0], sizes = [4, 128], strides = [1, 1]} : vector<32x128xf32> to vector<4x128xf32>
    %126 = vector.shape_cast %125 : vector<4x128xf32> to vector<4x1x128xf32>
    %127 = vector.broadcast %126 : vector<4x1x128xf32> to vector<4x4x128xf32>
    %128 = arith.mulf %94, %127 : vector<4x4x128xf32>
    %cst_16 = arith.constant dense<0.000000e+00> : vector<4x128xf32>
    %129 = vector.multi_reduction <add>, %128, %cst_16 [0] : vector<4x4x128xf32> to vector<4x128xf32>
    %130 = vector.extract_strided_slice %19 {offsets = [28, 0], sizes = [4, 128], strides = [1, 1]} : vector<32x128xf32> to vector<4x128xf32>
    %131 = vector.shape_cast %130 : vector<4x128xf32> to vector<4x1x128xf32>
    %132 = vector.broadcast %131 : vector<4x1x128xf32> to vector<4x4x128xf32>
    %133 = arith.mulf %94, %132 : vector<4x4x128xf32>
    %cst_17 = arith.constant dense<0.000000e+00> : vector<4x128xf32>
    %134 = vector.multi_reduction <add>, %133, %cst_17 [0] : vector<4x4x128xf32> to vector<4x128xf32>
    %135 = tpu.concatenate %99, %104, %109, %114, %119, %124, %129, %134 in 0 : vector<4x128xf32>, vector<4x128xf32>, vector<4x128xf32>, vector<4x128xf32>, vector<4x128xf32>, vector<4x128xf32>, vector<4x128xf32>, vector<4x128xf32> -> vector<32x128xf32>
    %c0_18 = arith.constant 0 : index
    %c0_19 = arith.constant 0 : index
    %136 = vector.load %arg5[%c0_18, %c0_19] : memref<4x32xbf16, #tpu.memory_space<vmem>>, vector<4x32xbf16>
    %137 = arith.truncf %135 : vector<32x128xf32> to vector<32x128xbf16>
    %cst_20 = arith.constant dense<0.000000e+00> : vector<4x128xf32>
    %138 = tpu.matmul %136, %137, %cst_20 {dimension_numbers = #tpu.dot_dimension_numbers<[1], [0], [0], [1], [0, 0, 1, 1], [], []>} : vector<4x32xbf16>, vector<32x128xbf16>, vector<4x128xf32> -> vector<4x128xf32>
    %cst_21 = arith.constant 0.000000e+00 : f32
    %139 = vector.broadcast %cst_21 : f32 to vector<4x128xf32>
    %140 = arith.maximumf %138, %139 : vector<4x128xf32>
    %c0_22 = arith.constant 0 : index
    %c0_23 = arith.constant 0 : index
    %c0_24 = arith.constant 0 : index
    %141 = vector.load %arg6[%c0_22, %c0_23, %c0_24] : memref<1x4x128xf32, #tpu.memory_space<vmem>>, vector<1x4x128xf32>
    %142 = vector.shape_cast %141 : vector<1x4x128xf32> to vector<4x128xf32>
    %143 = vector.shape_cast %140 : vector<4x128xf32> to vector<1x4x128xf32>
    tpu.vector_store %arg6[%c0_22, %c0_23, %c0_24], %143 {strides = array<i32>} : memref<1x4x128xf32, #tpu.memory_space<vmem>>, vector<1x4x128xf32>,
    return
  }
  func.func @transform_0(%arg0: i32, %arg1: i32) -> (i32, i32, i32) {
    %c0_i32 = arith.constant 0 : i32
    %c0_i32_0 = arith.constant 0 : i32
    return %arg0, %c0_i32, %arg1 : i32, i32, i32
  }
  func.func @transform_1(%arg0: i32, %arg1: i32) -> (i32, i32, i32) {
    %c1_i32 = arith.constant 1 : i32
    %0 = arith.addi %arg1, %c1_i32 : i32
    %c1_i32_0 = arith.constant 1 : i32
    %1 = arith.muli %0, %c1_i32_0 : i32
    %c0_i32 = arith.constant 0 : i32
    %c0_i32_1 = arith.constant 0 : i32
    return %arg0, %c0_i32, %1 : i32, i32, i32
  }
  func.func @transform_2(%arg0: i32, %arg1: i32) -> (i32, i32) {
    %c0_i32 = arith.constant 0 : i32
    %c0_i32_0 = arith.constant 0 : i32
    %c0_i32_1 = arith.constant 0 : i32
    return %c0_i32, %c0_i32_0 : i32, i32
  }
  func.func @transform_3(%arg0: i32, %arg1: i32) -> (i32, i32) {
    %c0_i32 = arith.constant 0 : i32
    %c0_i32_0 = arith.constant 0 : i32
    %c0_i32_1 = arith.constant 0 : i32
    return %c0_i32, %c0_i32_0 : i32, i32
  }
  func.func @transform_4(%arg0: i32, %arg1: i32) -> (i32, i32, i32) {
    %c0_i32 = arith.constant 0 : i32
    %c0_i32_0 = arith.constant 0 : i32
    return %arg0, %c0_i32, %arg1 : i32, i32, i32
  }
}

</mosaic_0001>

<llo_original>
// kernel: tpu_custom_call.1
$region0: #{tpu_custom_call.1}
  #allocation0 [shape = 'u32[]', space=smem, size = 0x4, offset = 0x4, fixed_abs, tag = 'smem constant byte address 0x4 - core index']
  #allocation1 [shape = 'u32[144,128]{1,0:T(1,128)}', space=vmem, size = 0x12000, scoped, tag = 'internal scratch']
  %s0 = inlined_call_operand.vmem [shape: bf16[2,4,512], index: 0, kind: input, shape index: {}]
  %s1 = inlined_call_operand.vmem [shape: bf16[2,4,512], index: 1, kind: input, shape index: {}]
  %s2 = inlined_call_operand.vmem [shape: bf16[96,36], index: 2, kind: input, shape index: {}]
  %s3 = inlined_call_operand.vmem [shape: bf16[4,32], index: 3, kind: input, shape index: {}]
  %s4 = inlined_call_operand.hbm [shape: f32[2,4,384], index: 4, kind: output, shape index: {}]
  %s5 = sld [smem:[#allocation0]]
  $region49: #{tpu_custom_call.1} parent=0
    _
  %s7 = ssub.s32 1, %s5
  %s8 = scalar_select 0, %s7, %s5
  $region1: #{tpu_custom_call.1} parent=0
    #allocation2 [shape = 'u8[4096]{0}', space=vmem, size = 0x1000, scoped, tag = 'output window, operand 0']
    #allocation3 [shape = 's32[2]{0}', space=sflag, size = 0x8, scoped, tag = 'scoped memory for tpu_custom_call.1']
    %9 = vsyncpa [#allocation3], 0
    %s10 = scalar_lea.sflag [#allocation3], 1
    %11 = vsyncpa %s10, 0
    loop: start=0, step=1, limit=8
    $region2: #{tpu_custom_call.1} parent=1 // loop_pre_header
      _
    $region3: #{tpu_custom_call.1} parent=1 // loop_header
      %s13 = sphi 0, %s17
      %p14 = scmp.ge.s32.totalorder %s13, 8
      %s20 = sphi 0, %s32
      %s21 = sphi 0, %s28
      %s22 = sphi 0, %s20
      %s23 = sphi 0, %s21
      %s24 = sphi 0, %s22
      %s25 = sphi 0, %s23
      %s37 = sphi 0, %s39
      %s40 = sphi 0, %s37
      %s41 = sphi 0, %s40
      %s57 = sphi 0, %s41
      %s67 = sphi 0, %s69
      %s70 = sphi 0, %s67
      %s71 = sphi 0, %s70
      %s87 = sphi 0, %s71
      %s91 = sphi 0, %s91
      %s93 = sphi 0, %s91
      %s94 = sphi 0, %s93
      %s108 = sphi 0, %s94
      %s112 = sphi 0, %s112
      %s114 = sphi 0, %s112
      %s115 = sphi 0, %s114
      %s129 = sphi 0, %s115
      %s137 = sphi 0, %s139
      %s140 = sphi 0, %s137
      %s141 = sphi 0, %s140
      %s157 = sphi 0, %s141
    $region4: #{tpu_custom_call.1} parent=1 // loop_header_branch
      %16 = sbr.rel (%p14) target = $region8
    $region5: #{tpu_custom_call.1} parent=1 // loop_body
      %s18 = ssub.s32 %s13, 1
      %s19 = ssub.s32 %s13, 2
      %s26 = sadd.s32 1, %s21
      %p27 = scmp.ge.s32.totalorder %s26, 3
      %s28 = scalar_select %p27, 0, %s26
      %s29 = sadd.s32 1, %s20
      %s30 = scalar_select %p27, %s29, %s20
      %p31 = scmp.ge.s32.totalorder %s30, 2
      %s32 = scalar_select %p31, 0, %s30
      %s33 = ssub.s32 %s20, %s32
      %s34 = ssub.s32 %s21, %s28
      %s35 = sor.u32 %s33, %s34
      %p36 = scmp.eq.s32.totalorder %s35, 0
      %s38 = sadd.s32 %s37, 1
      %s39 = scalar_select %p36, %s37, %s38
      %p42 = pneg %p36
      %p43 = scmp.eq.s32.totalorder %s13, 5
      %p44 = por %p42, %p43
      %p45 = scmp.ne.s32.totalorder %s37, %s40
      %p46 = scmp.eq.s32.totalorder %s13, 0
      %p47 = por %p45, %p46
      %p48 = scmp.ne.s32.totalorder %s37, %s40
      %p49 = scmp.eq.s32.totalorder %s18, 5
      %p50 = por %p48, %p49
      %p51 = scmp.ne.s32.totalorder %s40, %s41
      %p52 = scmp.eq.s32.totalorder %s18, 0
      %p53 = por %p51, %p52
      %p54 = scmp.ne.s32.totalorder %s40, %s41
      %p55 = scmp.eq.s32.totalorder %s19, 5
      %p56 = por %p54, %p55
      %p58 = scmp.ne.s32.totalorder %s41, %s57
      %p59 = scmp.eq.s32.totalorder %s19, 0
      %p60 = por %p58, %p59
      %s61 = sadd.s32 %s21, 1
      %s62 = sadd.s32 %s28, 1
      %s63 = ssub.s32 %s20, %s32
      %s64 = ssub.s32 %s61, %s62
      %s65 = sor.u32 %s63, %s64
      %p66 = scmp.eq.s32.totalorder %s65, 0
      %s68 = sadd.s32 %s67, 1
      %s69 = scalar_select %p66, %s67, %s68
      %p72 = pneg %p66
      %p73 = scmp.eq.s32.totalorder %s13, 5
      %p74 = por %p72, %p73
      %p75 = scmp.ne.s32.totalorder %s67, %s70
      %p76 = scmp.eq.s32.totalorder %s13, 0
      %p77 = por %p75, %p76
      %p78 = scmp.ne.s32.totalorder %s67, %s70
      %p79 = scmp.eq.s32.totalorder %s18, 5
      %p80 = por %p78, %p79
      %p81 = scmp.ne.s32.totalorder %s70, %s71
      %p82 = scmp.eq.s32.totalorder %s18, 0
      %p83 = por %p81, %p82
      %p84 = scmp.ne.s32.totalorder %s70, %s71
      %p85 = scmp.eq.s32.totalorder %s19, 5
      %p86 = por %p84, %p85
      %p88 = scmp.ne.s32.totalorder %s71, %s87
      %p89 = scmp.eq.s32.totalorder %s19, 0
      %p90 = por %p88, %p89
      %s92 = sadd.s32 %s91, 1
      %p95 = scmp.eq.s32.totalorder %s13, 5
      %p96 = scmp.ne.s32.totalorder %s91, %s93
      %p97 = scmp.eq.s32.totalorder %s13, 0
      %p98 = por %p96, %p97
      %p99 = scmp.ne.s32.totalorder %s91, %s93
      %p100 = scmp.eq.s32.totalorder %s18, 5
      %p101 = por %p99, %p100
      %p102 = scmp.ne.s32.totalorder %s93, %s94
      %p103 = scmp.eq.s32.totalorder %s18, 0
      %p104 = por %p102, %p103
      %p105 = scmp.ne.s32.totalorder %s93, %s94
      %p106 = scmp.eq.s32.totalorder %s19, 5
      %p107 = por %p105, %p106
      %p109 = scmp.ne.s32.totalorder %s94, %s108
      %p110 = scmp.eq.s32.totalorder %s19, 0
      %p111 = por %p109, %p110
      %s113 = sadd.s32 %s112, 1
      %p116 = scmp.eq.s32.totalorder %s13, 5
      %p117 = scmp.ne.s32.totalorder %s112, %s114
      %p118 = scmp.eq.s32.totalorder %s13, 0
      %p119 = por %p117, %p118
      %p120 = scmp.ne.s32.totalorder %s112, %s114
      %p121 = scmp.eq.s32.totalorder %s18, 5
      %p122 = por %p120, %p121
      %p123 = scmp.ne.s32.totalorder %s114, %s115
      %p124 = scmp.eq.s32.totalorder %s18, 0
      %p125 = por %p123, %p124
      %p126 = scmp.ne.s32.totalorder %s114, %s115
      %p127 = scmp.eq.s32.totalorder %s19, 5
      %p128 = por %p126, %p127
      %p130 = scmp.ne.s32.totalorder %s115, %s129
      %p131 = scmp.eq.s32.totalorder %s19, 0
      %p132 = por %p130, %p131
      %s133 = ssub.s32 %s20, %s32
      %s134 = ssub.s32 %s21, %s28
      %s135 = sor.u32 %s133, %s134
      %p136 = scmp.eq.s32.totalorder %s135, 0
      %s138 = sadd.s32 %s137, 1
      %s139 = scalar_select %p136, %s137, %s138
      %p142 = pneg %p136
      %p143 = scmp.eq.s32.totalorder %s13, 5
      %p144 = por %p142, %p143
      %p145 = scmp.ne.s32.totalorder %s137, %s140
      %p146 = scmp.eq.s32.totalorder %s13, 0
      %p147 = por %p145, %p146
      %p148 = scmp.ne.s32.totalorder %s137, %s140
      %p149 = scmp.eq.s32.totalorder %s18, 5
      %p150 = por %p148, %p149
      %p151 = scmp.ne.s32.totalorder %s140, %s141
      %p152 = scmp.eq.s32.totalorder %s18, 0
      %p153 = por %p151, %p152
      %p154 = scmp.ne.s32.totalorder %s140, %s141
      %p155 = scmp.eq.s32.totalorder %s19, 5
      %p156 = por %p154, %p155
      %p158 = scmp.ne.s32.totalorder %s141, %s157
      %p159 = scmp.eq.s32.totalorder %s19, 0
      %p160 = por %p158, %p159
      %p161 = scmp.le.s32.totalorder 1, %s13
      %p162 = scmp.lt.s32.totalorder %s13, 7
      %p163 = pnand %p161, %p162
      %p164 = pneg %p163
      // Predicated region
      $region9: #{tpu_custom_call.1} parent=5 // pred_check
        _
      $region10: #{tpu_custom_call.1} parent=5 // pred_check_branch
        %166 = sbr.rel (%p163) target = $region12
      $region11: #{tpu_custom_call.1} parent=5 // pred_region
        %s167 = ssub.s32 %s13, 1
        // Predicated region
        $region13: #{tpu_custom_call.1} parent=11 // pred_check
          %p168 = pneg %p104
        $region14: #{tpu_custom_call.1} parent=11 // pred_check_branch
          %170 = sbr.rel (%p168) target = $region16
        $region15: #{tpu_custom_call.1} parent=11 // pred_region
          _
        $region16: #{tpu_custom_call.1} parent=11 // pred_fallthru
          _
        // Predicated region
        $region17: #{tpu_custom_call.1} parent=11 // pred_check
          %p171 = pneg %p125
        $region18: #{tpu_custom_call.1} parent=11 // pred_check_branch
          %173 = sbr.rel (%p171) target = $region20
        $region19: #{tpu_custom_call.1} parent=11 // pred_region
          _
        $region20: #{tpu_custom_call.1} parent=11 // pred_fallthru
          _
      $region12: #{tpu_custom_call.1} parent=5 // pred_fallthru
        _
      %p174 = scmp.lt.s32.totalorder %s13, 6
      // Predicated region
      $region21: #{tpu_custom_call.1} parent=5 // pred_check
        %p175 = pneg %p174
      $region22: #{tpu_custom_call.1} parent=5 // pred_check_branch
        %177 = sbr.rel (%p175) target = $region24
      $region23: #{tpu_custom_call.1} parent=5 // pred_region
        // Predicated region
        $region25: #{tpu_custom_call.1} parent=23 // pred_check
          %p178 = pneg %p47
        $region26: #{tpu_custom_call.1} parent=23 // pred_check_branch
          %180 = sbr.rel (%p178) target = $region28
        $region27: #{tpu_custom_call.1} parent=23 // pred_region
          %p181 = scmp.lt.s32.totalorder %s20, 1
          %s182 = scalar_select %p181, %s20, 1
          %p183 = scmp.lt.s32.totalorder %s21, 3
          %s184 = scalar_select %p183, %s21, 3
          %s185 = smul.addr %s182, 4
          %s186 = sadd.s32 %s184, %s185
          %s187 = smul.addr %s186, 2
          %s188 = scalar_lea.vmem %s0, %s187
        $region28: #{tpu_custom_call.1} parent=23 // pred_fallthru
          _
        // Predicated region
        $region29: #{tpu_custom_call.1} parent=23 // pred_check
          %p189 = pneg %p77
        $region30: #{tpu_custom_call.1} parent=23 // pred_check_branch
          %191 = sbr.rel (%p189) target = $region32
        $region31: #{tpu_custom_call.1} parent=23 // pred_region
          %s192 = sadd.s32 %s21, 1
          %p193 = scmp.lt.s32.totalorder %s20, 1
          %s194 = scalar_select %p193, %s20, 1
          %p195 = scmp.lt.s32.totalorder %s192, 3
          %s196 = scalar_select %p195, %s192, 3
          %s197 = smul.addr %s194, 4
          %s198 = sadd.s32 %s196, %s197
          %s199 = smul.addr %s198, 2
          %s200 = scalar_lea.vmem %s1, %s199
          %s201 = sadd.s32 %s21, 1
        $region32: #{tpu_custom_call.1} parent=23 // pred_fallthru
          _
      $region24: #{tpu_custom_call.1} parent=5 // pred_fallthru
        _
      %p202 = scmp.le.s32.totalorder 1, %s13
      %p203 = scmp.lt.s32.totalorder %s13, 7
      %p204 = pnand %p202, %p203
      %p205 = pneg %p204
      // Predicated region
      $region33: #{tpu_custom_call.1} parent=5 // pred_check
        _
      $region34: #{tpu_custom_call.1} parent=5 // pred_check_branch
        %207 = sbr.rel (%p204) target = $region36
      $region35: #{tpu_custom_call.1} parent=5 // pred_region
        %s208 = ssub.s32 %s13, 1
        %p209 = scmp.lt.s32.totalorder %s22, 1
        %s210 = scalar_select %p209, %s22, 1
        %p211 = scmp.lt.s32.totalorder %s23, 3
        %s212 = scalar_select %p211, %s23, 3
        %s213 = smul.addr %s210, 4
        %s214 = sadd.s32 %s212, %s213
        %s215 = smul.addr %s214, 2
        %s216 = scalar_lea.vmem %s0, %s215
        %p217 = pneg %p53
        %p218 = pneg %p50
        %s219 = sadd.s32 %s23, 1
        %p220 = scmp.lt.s32.totalorder %s22, 1
        %s221 = scalar_select %p220, %s22, 1
        %p222 = scmp.lt.s32.totalorder %s219, 3
        %s223 = scalar_select %p222, %s219, 3
        %s224 = smul.addr %s221, 4
        %s225 = sadd.s32 %s223, %s224
        %s226 = smul.addr %s225, 2
        %s227 = scalar_lea.vmem %s1, %s226
        %p228 = pneg %p83
        %p229 = pneg %p80
        %p230 = pneg %p104
        %p231 = pneg %p101
        %p232 = pneg %p125
        %p233 = pneg %p122
        %p234 = pneg %p153
        %p235 = pneg %p150
        %s236 = sand.u32 %s140, 1
        %s237 = scalar_lea.sflag [#allocation3], %s236
        %s238 = sand.u32 %s140, 1
        %s239 = smul.addr %s238, 4
        %s240 = scalar_lea.vmem [#allocation2], %s239
        %p241 = scmp.lt.s32.totalorder %s22, 1
        %s242 = scalar_select %p241, %s22, 1
        %p243 = scmp.lt.s32.totalorder %s23, 3
        %s244 = scalar_select %p243, %s23, 3
        %s245 = smul.addr %s242, 4
        %s246 = sadd.s32 %s244, %s245
        %s247 = smul.addr %s246, 2
        %s248 = scalar_lea.vmem %s0, %s247
        %s249 = sadd.s32 %s23, 1
        %p250 = scmp.lt.s32.totalorder %s22, 1
        %s251 = scalar_select %p250, %s22, 1
        %p252 = scmp.lt.s32.totalorder %s249, 3
        %s253 = scalar_select %p252, %s249, 3
        %s254 = smul.addr %s251, 4
        %s255 = sadd.s32 %s253, %s254
        %s256 = smul.addr %s255, 2
        %s257 = scalar_lea.vmem %s1, %s256
        %s258 = sadd.s32 %s23, 1
        %v260 = vld [vmem:[%s248] sm:$0x3]
        %v261 = vld [vmem:[%s257] sm:$0x3]
        %v264 = vrot.slane %v260, 6
        %v265 = vrot.slane %v261, 6
        %266 = vrot.lane.b32.xlu0 %v264, 127
        %v267 = vpop.permute.xlu0 %266
        %268 = vrot.lane.b32.xlu0 %v265, 127
        %v269 = vpop.permute.xlu0 %268
        %vm270 = vcmask 1039360
        %v271 = vsel %vm270, %v267, %v269
        %v272 = vrot.slane %v260, 4
        %v273 = vrot.slane %v261, 4
        %274 = vrot.lane.b32.xlu0 %v272, 126
        %v275 = vpop.permute.xlu0 %274
        %276 = vrot.lane.b32.xlu0 %v273, 126
        %v277 = vpop.permute.xlu0 %276
        %vm278 = vcmask 1031168
        %v279 = vsel %vm278, %v275, %v277
        %v280 = vrot.slane %v260, 2
        %v281 = vrot.slane %v261, 2
        %282 = vrot.lane.b32.xlu0 %v280, 110
        %v283 = vpop.permute.xlu0 %282
        %284 = vrot.lane.b32.xlu0 %v281, 110
        %v285 = vpop.permute.xlu0 %284
        %vm286 = vcmask 900096
        %v287 = vsel %vm286, %v283, %v285
        %288 = vrot.lane.b32.xlu0 %v260, 109
        %v289 = vpop.permute.xlu0 %288
        %290 = vrot.lane.b32.xlu0 %v261, 109
        %v291 = vpop.permute.xlu0 %290
        %vm292 = vcmask 891904
        %v293 = vsel %vm292, %v289, %v291
        %294 = vrot.lane.b32.xlu0 %v264, 108
        %v295 = vpop.permute.xlu0 %294
        %296 = vrot.lane.b32.xlu0 %v265, 108
        %v297 = vpop.permute.xlu0 %296
        %vm298 = vcmask 883712
        %v299 = vsel %vm298, %v295, %v297
        %300 = vrot.lane.b32.xlu0 %v272, 92
        %v301 = vpop.permute.xlu0 %300
        %302 = vrot.lane.b32.xlu0 %v273, 92
        %v303 = vpop.permute.xlu0 %302
        %vm304 = vcmask 752640
        %v305 = vsel %vm304, %v301, %v303
        %306 = vrot.lane.b32.xlu0 %v280, 91
        %v307 = vpop.permute.xlu0 %306
        %308 = vrot.lane.b32.xlu0 %v281, 91
        %v309 = vpop.permute.xlu0 %308
        %vm310 = vcmask 744448
        %v311 = vsel %vm310, %v307, %v309
        %312 = vrot.lane.b32.xlu0 %v260, 90
        %v313 = vpop.permute.xlu0 %312
        %314 = vrot.lane.b32.xlu0 %v261, 90
        %v315 = vpop.permute.xlu0 %314
        %vm316 = vcmask 736256
        %v317 = vsel %vm316, %v313, %v315
        %vm318 = vcmask 1041408
        %v321 = vsel %vm318, %v260, %v271
        %vm322 = vcmask 1043456
        %v324 = vsel %vm322, %v321, %v279
        %vm325 = vcmask 1045504
        %v327 = vsel %vm325, %v324, %v287
        %v331 = vsel %vm318, %v293, %v299
        %v333 = vsel %vm322, %v331, %v305
        %v335 = vsel %vm325, %v333, %v311
        %v337 = vld [vmem:[%s2] sm:$0xf]
        %v338 = vld [vmem:[%s2 + $0x4] sm:$0xf]
        %v339 = vld [vmem:[%s2 + $0x8] sm:$0xf]
        %v340 = vld [vmem:[%s2 + $0xc] sm:$0xf]
        %v341 = vld [vmem:[%s2 + $0x10] sm:$0xf]
        %v342 = vld [vmem:[%s2 + $0x14] sm:$0xf]
        %v343 = vld [vmem:[%s2 + $0x18] sm:$0xf]
        %v344 = vld [vmem:[%s2 + $0x1c] sm:$0xf]
        %v345 = vld [vmem:[%s2 + $0x20] sm:$0xf]
        %v346 = vld [vmem:[%s2 + $0x24] sm:$0xf]
        %v347 = vld [vmem:[%s2 + $0x28] sm:$0xf]
        %v348 = vld [vmem:[%s2 + $0x2c] sm:$0xf]
        %v361 = vunpack.c.l.b16 %v337
        %v362 = vunpack.c.l.b16 %v338
        %v363 = vunpack.c.l.b16 %v339
        %v364 = vunpack.c.l.b16 %v340
        %v365 = vunpack.c.l.b16 %v341
        %v366 = vunpack.c.l.b16 %v342
        %v367 = vunpack.c.l.b16 %v343
        %v368 = vunpack.c.l.b16 %v344
        %v369 = vunpack.c.l.b16 %v345
        %v370 = vunpack.c.l.b16 %v346
        %v371 = vunpack.c.l.b16 %v347
        %v372 = vunpack.c.l.b16 %v348
        %v373 = vpack.c.b16 %v362, %v361
        %v374 = vpack.c.b16 %v364, %v363
        %v375 = vpack.c.b16 %v366, %v365
        %v376 = vpack.c.b16 %v368, %v367
        %v377 = vpack.c.b16 %v370, %v369
        %v378 = vpack.c.b16 %v372, %v371
        %vm379 = vcmask 293888
        %v381 = vsel %vm379, %v373, 0
        %v384 = vsel %vm379, %v374, 0
        %v387 = vsel %vm379, %v375, 0
        %v390 = vsel %vm379, %v376, 0
        %v393 = vsel %vm379, %v377, 0
        %v396 = vsel %vm379, %v378, 0
        %v399 = vsel %vm318, %v317, 0
        %401 = vmatprep.subr.bf16.mxu0 0
        %402 = vmatpush1.bf16.msra.mxu0 0
        %403 = vmatprep.subr.bf16.mxu0 0
        %404 = vmatpush1.bf16.msra.mxu0 0
        %405 = vmatprep.subr.bf16.mxu0 0
        %406 = vmatpush1.bf16.msra.mxu0 0
        %407 = vmatprep.subr.bf16.mxu0 0
        %408 = vmatpush1.bf16.msra.mxu0 0
        %409 = vmatprep.subr.bf16.mxu0 0
        %410 = vmatpush1.bf16.msra.mxu0 0
        %411 = vmatprep.subr.bf16.mxu0 0
        %412 = vmatpush1.bf16.msra.mxu0 %v399
        %413 = vmatprep.subr.bf16.mxu0 0
        %414 = vmatpush1.bf16.msra.mxu0 %v335
        %415 = vmatprep.subr.bf16.mxu0 0
        %416 = vmatpush1.bf16.msra.mxu0 %v327
        %417 = vmatprep.subr.bf16.mxu0 0
        %418 = vmatpush2.bf16.msra.mxu0 0
        %419 = vmatprep.subr.bf16.mxu0 0
        %420 = vmatpush2.bf16.msra.mxu0 0
        %421 = vmatprep.subr.bf16.mxu0 0
        %422 = vmatpush2.bf16.msra.mxu0 0
        %423 = vmatprep.subr.bf16.mxu0 0
        %424 = vmatpush2.bf16.msra.mxu0 0
        %425 = vmatprep.subr.bf16.mxu0 0
        %426 = vmatpush2.bf16.msra.mxu0 0
        %427 = vmatprep.subr.bf16.mxu0 0
        %428 = vmatpush2.bf16.msra.mxu0 0
        %429 = vmatprep.subr.bf16.mxu0 0
        %430 = vmatpush2.bf16.msra.mxu0 0
        %431 = vmatprep.subr.bf16.mxu0 0
        %432 = vmatpush2.bf16.msra.mxu0 0
        %433 = vmatprep.mubr.bf16.mxu0 0
        %434 = vmatmul.mubr.bf16.gmra.mxu0 %v381
        %v435 = vpop.f32.mrf.mxu0
        %v436 = vadd.f32 0.0, %v435
        %v437 = vpop.f32.mrf.mxu0
        %v438 = vpop.f32.mrf.mxu0
        %v439 = vadd.f32 0.0, %v438
        %v440 = vpop.f32.mrf.mxu0
        %441 = vmatprep.mubr.bf16.mxu0 0
        %442 = vmatmul.mubr.bf16.gmra.mxu0 %v384
        %v443 = vpop.f32.mrf.mxu0
        %v444 = vadd.f32 0.0, %v443
        %v445 = vpop.f32.mrf.mxu0
        %v446 = vpop.f32.mrf.mxu0
        %v447 = vadd.f32 0.0, %v446
        %v448 = vpop.f32.mrf.mxu0
        %449 = vmatprep.mubr.bf16.mxu0 0
        %450 = vmatmul.mubr.bf16.gmra.mxu0 %v387
        %v451 = vpop.f32.mrf.mxu0
        %v452 = vadd.f32 0.0, %v451
        %v453 = vpop.f32.mrf.mxu0
        %v454 = vpop.f32.mrf.mxu0
        %v455 = vadd.f32 0.0, %v454
        %v456 = vpop.f32.mrf.mxu0
        %457 = vmatprep.mubr.bf16.mxu0 0
        %458 = vmatmul.mubr.bf16.gmra.mxu0 %v390
        %v459 = vpop.f32.mrf.mxu0
        %v460 = vadd.f32 0.0, %v459
        %v461 = vpop.f32.mrf.mxu0
        %v462 = vpop.f32.mrf.mxu0
        %v463 = vadd.f32 0.0, %v462
        %v464 = vpop.f32.mrf.mxu0
        %465 = vmatprep.mubr.bf16.mxu0 0
        %466 = vmatmul.mubr.bf16.gmra.mxu0 %v393
        %v467 = vpop.f32.mrf.mxu0
        %v468 = vadd.f32 0.0, %v467
        %v469 = vpop.f32.mrf.mxu0
        %v470 = vpop.f32.mrf.mxu0
        %v471 = vadd.f32 0.0, %v470
        %v472 = vpop.f32.mrf.mxu0
        %473 = vmatprep.mubr.bf16.mxu0 0
        %474 = vmatmul.mubr.bf16.gmra.mxu0 %v396
        %v475 = vpop.f32.mrf.mxu0
        %v476 = vadd.f32 0.0, %v475
        %v477 = vpop.f32.mrf.mxu0
        %v478 = vpop.f32.mrf.mxu0
        %v479 = vadd.f32 0.0, %v478
        %v480 = vpop.f32.mrf.mxu0
        %481 = vdwg.mxu0
        %v484 = vunpack.c.l.s4 1966171168
        %v485 = vunpack.c.0.s8 %v484
        %v486 = vlaneseq
        %v487 = vshrl.u32 %v486, 7
        %v488 = vsub.s32 %v485, %v487
        %v489 = vrot.slane %v452, %v488
        %v490 = vcombine.high %v489, %v489
        %v492 = vunpack.c.l.s4 1966171168
        %v493 = vunpack.c.0.s8 %v492
        %v494 = vlaneseq
        %v495 = vshrl.u32 %v494, 7
        %v496 = vsub.s32 %v493, %v495
        %v497 = vrot.slane %v489, %v496
        %v499 = vunpack.c.l.s4 1966171168
        %v500 = vunpack.c.0.s8 %v499
        %v501 = vlaneseq
        %v502 = vshrl.u32 %v501, 7
        %v503 = vsub.s32 %v500, %v502
        %v504 = vrot.slane %v490, %v503
        %v505 = vcombine.high %v497, %v497
        %v506 = vcombine.high %v504, %v504
        %v507 = vlaneseq
        %v508 = vshrl.u32 %v507, 7
        %v509 = vsub.s32 0, %v508
        %v510 = vrot.slane %v497, %v509
        %v511 = vlaneseq
        %v512 = vshrl.u32 %v511, 7
        %v513 = vsub.s32 0, %v512
        %v514 = vrot.slane %v504, %v513
        %v515 = vlaneseq
        %v516 = vshrl.u32 %v515, 7
        %v517 = vsub.s32 0, %v516
        %v518 = vrot.slane %v505, %v517
        %v519 = vlaneseq
        %v520 = vshrl.u32 %v519, 7
        %v521 = vsub.s32 0, %v520
        %v522 = vrot.slane %v506, %v521
        %v527 = vmul.f32 %v510, %v436
        %v528 = vmul.f32 %v514, %v436
        %v529 = vmul.f32 %v518, %v436
        %v530 = vmul.f32 %v522, %v436
        %v531 = vadd.f32 %v527, 0.0
        %v532 = vadd.f32 %v528, 0.0
        %v533 = vadd.f32 %v529, 0.0
        %v534 = vadd.f32 %v530, 0.0
        %v535 = vcombine.high %v452, %v452
        %v537 = vunpack.c.l.s4 1966171168
        %v538 = vunpack.c.0.s8 %v537
        %v539 = vlaneseq
        %v540 = vshrl.u32 %v539, 7
        %v541 = vsub.s32 %v538, %v540
        %v542 = vrot.slane %v535, %v541
        %v543 = vcombine.high %v542, %v542
        %v545 = vunpack.c.l.s4 1966171168
        %v546 = vunpack.c.0.s8 %v545
        %v547 = vlaneseq
        %v548 = vshrl.u32 %v547, 7
        %v549 = vsub.s32 %v546, %v548
        %v550 = vrot.slane %v542, %v549
        %v552 = vunpack.c.l.s4 1966171168
        %v553 = vunpack.c.0.s8 %v552
        %v554 = vlaneseq
        %v555 = vshrl.u32 %v554, 7
        %v556 = vsub.s32 %v553, %v555
        %v557 = vrot.slane %v543, %v556
        %v558 = vcombine.high %v550, %v550
        %v559 = vcombine.high %v557, %v557
        %v560 = vlaneseq
        %v561 = vshrl.u32 %v560, 7
        %v562 = vsub.s32 0, %v561
        %v563 = vrot.slane %v550, %v562
        %v564 = vlaneseq
        %v565 = vshrl.u32 %v564, 7
        %v566 = vsub.s32 0, %v565
        %v567 = vrot.slane %v557, %v566
        %v568 = vlaneseq
        %v569 = vshrl.u32 %v568, 7
        %v570 = vsub.s32 0, %v569
        %v571 = vrot.slane %v558, %v570
        %v572 = vlaneseq
        %v573 = vshrl.u32 %v572, 7
        %v574 = vsub.s32 0, %v573
        %v575 = vrot.slane %v559, %v574
        %v580 = vmul.f32 %v563, %v436
        %v581 = vmul.f32 %v567, %v436
        %v582 = vmul.f32 %v571, %v436
        %v583 = vmul.f32 %v575, %v436
        %v588 = vrot.slane %v580, 4
        %v589 = vrot.slane %v581, 4
        %v590 = vrot.slane %v582, 4
        %v591 = vrot.slane %v583, 4
        %v596 = vadd.f32 %v531, %v588
        %v597 = vadd.f32 %v532, %v589
        %v598 = vadd.f32 %v533, %v590
        %v599 = vadd.f32 %v534, %v591
        %v602 = vunpack.c.l.s4 1966171168
        %v603 = vunpack.c.0.s8 %v602
        %v604 = vlaneseq
        %v605 = vshrl.u32 %v604, 7
        %v606 = vsub.s32 %v603, %v605
        %v607 = vrot.slane %v455, %v606
        %v608 = vcombine.high %v607, %v607
        %v610 = vunpack.c.l.s4 1966171168
        %v611 = vunpack.c.0.s8 %v610
        %v612 = vlaneseq
        %v613 = vshrl.u32 %v612, 7
        %v614 = vsub.s32 %v611, %v613
        %v615 = vrot.slane %v607, %v614
        %v617 = vunpack.c.l.s4 1966171168
        %v618 = vunpack.c.0.s8 %v617
        %v619 = vlaneseq
        %v620 = vshrl.u32 %v619, 7
        %v621 = vsub.s32 %v618, %v620
        %v622 = vrot.slane %v608, %v621
        %v623 = vcombine.high %v615, %v615
        %v624 = vcombine.high %v622, %v622
        %v625 = vlaneseq
        %v626 = vshrl.u32 %v625, 7
        %v627 = vsub.s32 0, %v626
        %v628 = vrot.slane %v615, %v627
        %v629 = vlaneseq
        %v630 = vshrl.u32 %v629, 7
        %v631 = vsub.s32 0, %v630
        %v632 = vrot.slane %v622, %v631
        %v633 = vlaneseq
        %v634 = vshrl.u32 %v633, 7
        %v635 = vsub.s32 0, %v634
        %v636 = vrot.slane %v623, %v635
        %v637 = vlaneseq
        %v638 = vshrl.u32 %v637, 7
        %v639 = vsub.s32 0, %v638
        %v640 = vrot.slane %v624, %v639
        %v645 = vmul.f32 %v628, %v439
        %v646 = vmul.f32 %v632, %v439
        %v647 = vmul.f32 %v636, %v439
        %v648 = vmul.f32 %v640, %v439
        %v649 = vadd.f32 %v596, %v645
        %v650 = vadd.f32 %v597, %v646
        %v651 = vadd.f32 %v598, %v647
        %v652 = vadd.f32 %v599, %v648
        %v653 = vcombine.high %v455, %v455
        %v655 = vunpack.c.l.s4 1966171168
        %v656 = vunpack.c.0.s8 %v655
        %v657 = vlaneseq
        %v658 = vshrl.u32 %v657, 7
        %v659 = vsub.s32 %v656, %v658
        %v660 = vrot.slane %v653, %v659
        %v661 = vcombine.high %v660, %v660
        %v663 = vunpack.c.l.s4 1966171168
        %v664 = vunpack.c.0.s8 %v663
        %v665 = vlaneseq
        %v666 = vshrl.u32 %v665, 7
        %v667 = vsub.s32 %v664, %v666
        %v668 = vrot.slane %v660, %v667
        %v670 = vunpack.c.l.s4 1966171168
        %v671 = vunpack.c.0.s8 %v670
        %v672 = vlaneseq
        %v673 = vshrl.u32 %v672, 7
        %v674 = vsub.s32 %v671, %v673
        %v675 = vrot.slane %v661, %v674
        %v676 = vcombine.high %v668, %v668
        %v677 = vcombine.high %v675, %v675
        %v678 = vlaneseq
        %v679 = vshrl.u32 %v678, 7
        %v680 = vsub.s32 0, %v679
        %v681 = vrot.slane %v668, %v680
        %v682 = vlaneseq
        %v683 = vshrl.u32 %v682, 7
        %v684 = vsub.s32 0, %v683
        %v685 = vrot.slane %v675, %v684
        %v686 = vlaneseq
        %v687 = vshrl.u32 %v686, 7
        %v688 = vsub.s32 0, %v687
        %v689 = vrot.slane %v676, %v688
        %v690 = vlaneseq
        %v691 = vshrl.u32 %v690, 7
        %v692 = vsub.s32 0, %v691
        %v693 = vrot.slane %v677, %v692
        %v698 = vmul.f32 %v681, %v439
        %v699 = vmul.f32 %v685, %v439
        %v700 = vmul.f32 %v689, %v439
        %v701 = vmul.f32 %v693, %v439
        %v706 = vrot.slane %v698, 4
        %v707 = vrot.slane %v699, 4
        %v708 = vrot.slane %v700, 4
        %v709 = vrot.slane %v701, 4
        %v714 = vadd.f32 %v649, %v706
        %v715 = vadd.f32 %v650, %v707
        %v716 = vadd.f32 %v651, %v708
        %v717 = vadd.f32 %v652, %v709
        %v720 = vunpack.c.l.s4 1966171168
        %v721 = vunpack.c.0.s8 %v720
        %v722 = vlaneseq
        %v723 = vshrl.u32 %v722, 7
        %v724 = vsub.s32 %v721, %v723
        %v725 = vrot.slane %v460, %v724
        %v726 = vcombine.high %v725, %v725
        %v728 = vunpack.c.l.s4 1966171168
        %v729 = vunpack.c.0.s8 %v728
        %v730 = vlaneseq
        %v731 = vshrl.u32 %v730, 7
        %v732 = vsub.s32 %v729, %v731
        %v733 = vrot.slane %v725, %v732
        %v735 = vunpack.c.l.s4 1966171168
        %v736 = vunpack.c.0.s8 %v735
        %v737 = vlaneseq
        %v738 = vshrl.u32 %v737, 7
        %v739 = vsub.s32 %v736, %v738
        %v740 = vrot.slane %v726, %v739
        %v741 = vcombine.high %v733, %v733
        %v742 = vcombine.high %v740, %v740
        %v743 = vlaneseq
        %v744 = vshrl.u32 %v743, 7
        %v745 = vsub.s32 0, %v744
        %v746 = vrot.slane %v733, %v745
        %v747 = vlaneseq
        %v748 = vshrl.u32 %v747, 7
        %v749 = vsub.s32 0, %v748
        %v750 = vrot.slane %v740, %v749
        %v751 = vlaneseq
        %v752 = vshrl.u32 %v751, 7
        %v753 = vsub.s32 0, %v752
        %v754 = vrot.slane %v741, %v753
        %v755 = vlaneseq
        %v756 = vshrl.u32 %v755, 7
        %v757 = vsub.s32 0, %v756
        %v758 = vrot.slane %v742, %v757
        %v763 = vmul.f32 %v746, %v444
        %v764 = vmul.f32 %v750, %v444
        %v765 = vmul.f32 %v754, %v444
        %v766 = vmul.f32 %v758, %v444
        %v767 = vadd.f32 %v714, %v763
        %v768 = vadd.f32 %v715, %v764
        %v769 = vadd.f32 %v716, %v765
        %v770 = vadd.f32 %v717, %v766
        %v771 = vcombine.high %v460, %v460
        %v773 = vunpack.c.l.s4 1966171168
        %v774 = vunpack.c.0.s8 %v773
        %v775 = vlaneseq
        %v776 = vshrl.u32 %v775, 7
        %v777 = vsub.s32 %v774, %v776
        %v778 = vrot.slane %v771, %v777
        %v779 = vcombine.high %v778, %v778
        %v781 = vunpack.c.l.s4 1966171168
        %v782 = vunpack.c.0.s8 %v781
        %v783 = vlaneseq
        %v784 = vshrl.u32 %v783, 7
        %v785 = vsub.s32 %v782, %v784
        %v786 = vrot.slane %v778, %v785
        %v788 = vunpack.c.l.s4 1966171168
        %v789 = vunpack.c.0.s8 %v788
        %v790 = vlaneseq
        %v791 = vshrl.u32 %v790, 7
        %v792 = vsub.s32 %v789, %v791
        %v793 = vrot.slane %v779, %v792
        %v794 = vcombine.high %v786, %v786
        %v795 = vcombine.high %v793, %v793
        %v796 = vlaneseq
        %v797 = vshrl.u32 %v796, 7
        %v798 = vsub.s32 0, %v797
        %v799 = vrot.slane %v786, %v798
        %v800 = vlaneseq
        %v801 = vshrl.u32 %v800, 7
        %v802 = vsub.s32 0, %v801
        %v803 = vrot.slane %v793, %v802
        %v804 = vlaneseq
        %v805 = vshrl.u32 %v804, 7
        %v806 = vsub.s32 0, %v805
        %v807 = vrot.slane %v794, %v806
        %v808 = vlaneseq
        %v809 = vshrl.u32 %v808, 7
        %v810 = vsub.s32 0, %v809
        %v811 = vrot.slane %v795, %v810
        %v816 = vmul.f32 %v799, %v444
        %v817 = vmul.f32 %v803, %v444
        %v818 = vmul.f32 %v807, %v444
        %v819 = vmul.f32 %v811, %v444
        %v824 = vrot.slane %v816, 4
        %v825 = vrot.slane %v817, 4
        %v826 = vrot.slane %v818, 4
        %v827 = vrot.slane %v819, 4
        %v832 = vadd.f32 %v767, %v824
        %v833 = vadd.f32 %v768, %v825
        %v834 = vadd.f32 %v769, %v826
        %v835 = vadd.f32 %v770, %v827
        %v838 = vunpack.c.l.s4 1966171168
        %v839 = vunpack.c.0.s8 %v838
        %v840 = vlaneseq
        %v841 = vshrl.u32 %v840, 7
        %v842 = vsub.s32 %v839, %v841
        %v843 = vrot.slane %v463, %v842
        %v844 = vcombine.high %v843, %v843
        %v846 = vunpack.c.l.s4 1966171168
        %v847 = vunpack.c.0.s8 %v846
        %v848 = vlaneseq
        %v849 = vshrl.u32 %v848, 7
        %v850 = vsub.s32 %v847, %v849
        %v851 = vrot.slane %v843, %v850
        %v853 = vunpack.c.l.s4 1966171168
        %v854 = vunpack.c.0.s8 %v853
        %v855 = vlaneseq
        %v856 = vshrl.u32 %v855, 7
        %v857 = vsub.s32 %v854, %v856
        %v858 = vrot.slane %v844, %v857
        %v859 = vcombine.high %v851, %v851
        %v860 = vcombine.high %v858, %v858
        %v861 = vlaneseq
        %v862 = vshrl.u32 %v861, 7
        %v863 = vsub.s32 0, %v862
        %v864 = vrot.slane %v851, %v863
        %v865 = vlaneseq
        %v866 = vshrl.u32 %v865, 7
        %v867 = vsub.s32 0, %v866
        %v868 = vrot.slane %v858, %v867
        %v869 = vlaneseq
        %v870 = vshrl.u32 %v869, 7
        %v871 = vsub.s32 0, %v870
        %v872 = vrot.slane %v859, %v871
        %v873 = vlaneseq
        %v874 = vshrl.u32 %v873, 7
        %v875 = vsub.s32 0, %v874
        %v876 = vrot.slane %v860, %v875
        %v881 = vmul.f32 %v864, %v447
        %v882 = vmul.f32 %v868, %v447
        %v883 = vmul.f32 %v872, %v447
        %v884 = vmul.f32 %v876, %v447
        %v885 = vadd.f32 %v832, %v881
        %v886 = vadd.f32 %v833, %v882
        %v887 = vadd.f32 %v834, %v883
        %v888 = vadd.f32 %v835, %v884
        %v889 = vcombine.high %v463, %v463
        %v891 = vunpack.c.l.s4 1966171168
        %v892 = vunpack.c.0.s8 %v891
        %v893 = vlaneseq
        %v894 = vshrl.u32 %v893, 7
        %v895 = vsub.s32 %v892, %v894
        %v896 = vrot.slane %v889, %v895
        %v897 = vcombine.high %v896, %v896
        %v899 = vunpack.c.l.s4 1966171168
        %v900 = vunpack.c.0.s8 %v899
        %v901 = vlaneseq
        %v902 = vshrl.u32 %v901, 7
        %v903 = vsub.s32 %v900, %v902
        %v904 = vrot.slane %v896, %v903
        %v906 = vunpack.c.l.s4 1966171168
        %v907 = vunpack.c.0.s8 %v906
        %v908 = vlaneseq
        %v909 = vshrl.u32 %v908, 7
        %v910 = vsub.s32 %v907, %v909
        %v911 = vrot.slane %v897, %v910
        %v912 = vcombine.high %v904, %v904
        %v913 = vcombine.high %v911, %v911
        %v914 = vlaneseq
        %v915 = vshrl.u32 %v914, 7
        %v916 = vsub.s32 0, %v915
        %v917 = vrot.slane %v904, %v916
        %v918 = vlaneseq
        %v919 = vshrl.u32 %v918, 7
        %v920 = vsub.s32 0, %v919
        %v921 = vrot.slane %v911, %v920
        %v922 = vlaneseq
        %v923 = vshrl.u32 %v922, 7
        %v924 = vsub.s32 0, %v923
        %v925 = vrot.slane %v912, %v924
        %v926 = vlaneseq
        %v927 = vshrl.u32 %v926, 7
        %v928 = vsub.s32 0, %v927
        %v929 = vrot.slane %v913, %v928
        %v934 = vmul.f32 %v917, %v447
        %v935 = vmul.f32 %v921, %v447
        %v936 = vmul.f32 %v925, %v447
        %v937 = vmul.f32 %v929, %v447
        %v942 = vrot.slane %v934, 4
        %v943 = vrot.slane %v935, 4
        %v944 = vrot.slane %v936, 4
        %v945 = vrot.slane %v937, 4
        %v950 = vadd.f32 %v885, %v942
        %v951 = vadd.f32 %v886, %v943
        %v952 = vadd.f32 %v887, %v944
        %v953 = vadd.f32 %v888, %v945
        %v954 = vsel %vm322, %v950, -inf
        %v955 = vsel %vm322, %v951, -inf
        %v956 = vsel %vm322, %v952, -inf
        %v957 = vsel %vm322, %v953, -inf
        %v958 = vmax.f32 %v954, %v955
        %v959 = vmax.f32 %v956, %v957
        %v960 = vmax.f32 %v958, %v959
        %v961 = vsub.f32 %v950, %v960
        %v962 = vsub.f32 %v951, %v960
        %v963 = vsub.f32 %v952, %v960
        %v964 = vsub.f32 %v953, %v960
        %v965 = vmul.f32 %v961, 1.442695
        %v966 = vpow.pop %v965
        %v967 = vmul.f32 %v962, 1.442695
        %v968 = vpow.pop %v967
        %v969 = vmul.f32 %v963, 1.442695
        %v970 = vpow.pop %v969
        %v971 = vmul.f32 %v964, 1.442695
        %v972 = vpow.pop %v971
        %v973 = vsel %vm322, %v966, 0.0
        %v974 = vsel %vm322, %v968, 0.0
        %v975 = vadd.f32 %v973, %v974
        %v976 = vsel %vm322, %v970, 0.0
        %v977 = vadd.f32 %v975, %v976
        %v978 = vsel %vm322, %v972, 0.0
        %v979 = vadd.f32 %v977, %v978
        %v980 = vrcp.pop %v979
        %v981 = vmul.f32 %v966, %v980
        %v982 = vmul.f32 %v968, %v980
        %v983 = vmul.f32 %v970, %v980
        %v984 = vmul.f32 %v972, %v980
        %v987 = vunpack.c.l.s4 1966171168
        %v988 = vunpack.c.0.s8 %v987
        %v989 = vlaneseq
        %v990 = vshrl.u32 %v989, 7
        %v991 = vsub.s32 %v988, %v990
        %v992 = vrot.slane %v468, %v991
        %v993 = vcombine.high %v992, %v992
        %v995 = vunpack.c.l.s4 1966171168
        %v996 = vunpack.c.0.s8 %v995
        %v997 = vlaneseq
        %v998 = vshrl.u32 %v997, 7
        %v999 = vsub.s32 %v996, %v998
        %v1000 = vrot.slane %v992, %v999
        %v1002 = vunpack.c.l.s4 1966171168
        %v1003 = vunpack.c.0.s8 %v1002
        %v1004 = vlaneseq
        %v1005 = vshrl.u32 %v1004, 7
        %v1006 = vsub.s32 %v1003, %v1005
        %v1007 = vrot.slane %v993, %v1006
        %v1008 = vcombine.high %v1000, %v1000
        %v1009 = vcombine.high %v1007, %v1007
        %v1010 = vlaneseq
        %v1011 = vshrl.u32 %v1010, 7
        %v1012 = vsub.s32 0, %v1011
        %v1013 = vrot.slane %v1000, %v1012
        %v1014 = vlaneseq
        %v1015 = vshrl.u32 %v1014, 7
        %v1016 = vsub.s32 0, %v1015
        %v1017 = vrot.slane %v1007, %v1016
        %v1018 = vlaneseq
        %v1019 = vshrl.u32 %v1018, 7
        %v1020 = vsub.s32 0, %v1019
        %v1021 = vrot.slane %v1008, %v1020
        %v1022 = vlaneseq
        %v1023 = vshrl.u32 %v1022, 7
        %v1024 = vsub.s32 0, %v1023
        %v1025 = vrot.slane %v1009, %v1024
        %v1030 = vmul.f32 %v981, %v1013
        %v1031 = vmul.f32 %v982, %v1017
        %v1032 = vmul.f32 %v983, %v1021
        %v1033 = vmul.f32 %v984, %v1025
        %v1034 = vsel %vm322, %v1030, 0.0
        %v1035 = vsel %vm322, %v1031, 0.0
        %v1036 = vadd.f32 %v1034, %v1035
        %v1037 = vsel %vm322, %v1032, 0.0
        %v1038 = vadd.f32 %v1036, %v1037
        %v1039 = vsel %vm322, %v1033, 0.0
        %v1040 = vadd.f32 %v1038, %v1039
        %v1041 = vcombine.high %v468, %v468
        %v1043 = vunpack.c.l.s4 1966171168
        %v1044 = vunpack.c.0.s8 %v1043
        %v1045 = vlaneseq
        %v1046 = vshrl.u32 %v1045, 7
        %v1047 = vsub.s32 %v1044, %v1046
        %v1048 = vrot.slane %v1041, %v1047
        %v1049 = vcombine.high %v1048, %v1048
        %v1051 = vunpack.c.l.s4 1966171168
        %v1052 = vunpack.c.0.s8 %v1051
        %v1053 = vlaneseq
        %v1054 = vshrl.u32 %v1053, 7
        %v1055 = vsub.s32 %v1052, %v1054
        %v1056 = vrot.slane %v1048, %v1055
        %v1058 = vunpack.c.l.s4 1966171168
        %v1059 = vunpack.c.0.s8 %v1058
        %v1060 = vlaneseq
        %v1061 = vshrl.u32 %v1060, 7
        %v1062 = vsub.s32 %v1059, %v1061
        %v1063 = vrot.slane %v1049, %v1062
        %v1064 = vcombine.high %v1056, %v1056
        %v1065 = vcombine.high %v1063, %v1063
        %v1066 = vlaneseq
        %v1067 = vshrl.u32 %v1066, 7
        %v1068 = vsub.s32 0, %v1067
        %v1069 = vrot.slane %v1056, %v1068
        %v1070 = vlaneseq
        %v1071 = vshrl.u32 %v1070, 7
        %v1072 = vsub.s32 0, %v1071
        %v1073 = vrot.slane %v1063, %v1072
        %v1074 = vlaneseq
        %v1075 = vshrl.u32 %v1074, 7
        %v1076 = vsub.s32 0, %v1075
        %v1077 = vrot.slane %v1064, %v1076
        %v1078 = vlaneseq
        %v1079 = vshrl.u32 %v1078, 7
        %v1080 = vsub.s32 0, %v1079
        %v1081 = vrot.slane %v1065, %v1080
        %v1086 = vmul.f32 %v981, %v1069
        %v1087 = vmul.f32 %v982, %v1073
        %v1088 = vmul.f32 %v983, %v1077
        %v1089 = vmul.f32 %v984, %v1081
        %v1090 = vsel %vm322, %v1086, 0.0
        %v1091 = vsel %vm322, %v1087, 0.0
        %v1092 = vadd.f32 %v1090, %v1091
        %v1093 = vsel %vm322, %v1088, 0.0
        %v1094 = vadd.f32 %v1092, %v1093
        %v1095 = vsel %vm322, %v1089, 0.0
        %v1096 = vadd.f32 %v1094, %v1095
        %v1099 = vunpack.c.l.s4 1966171168
        %v1100 = vunpack.c.0.s8 %v1099
        %v1101 = vlaneseq
        %v1102 = vshrl.u32 %v1101, 7
        %v1103 = vsub.s32 %v1100, %v1102
        %v1104 = vrot.slane %v471, %v1103
        %v1105 = vcombine.high %v1104, %v1104
        %v1107 = vunpack.c.l.s4 1966171168
        %v1108 = vunpack.c.0.s8 %v1107
        %v1109 = vlaneseq
        %v1110 = vshrl.u32 %v1109, 7
        %v1111 = vsub.s32 %v1108, %v1110
        %v1112 = vrot.slane %v1104, %v1111
        %v1114 = vunpack.c.l.s4 1966171168
        %v1115 = vunpack.c.0.s8 %v1114
        %v1116 = vlaneseq
        %v1117 = vshrl.u32 %v1116, 7
        %v1118 = vsub.s32 %v1115, %v1117
        %v1119 = vrot.slane %v1105, %v1118
        %v1120 = vcombine.high %v1112, %v1112
        %v1121 = vcombine.high %v1119, %v1119
        %v1122 = vlaneseq
        %v1123 = vshrl.u32 %v1122, 7
        %v1124 = vsub.s32 0, %v1123
        %v1125 = vrot.slane %v1112, %v1124
        %v1126 = vlaneseq
        %v1127 = vshrl.u32 %v1126, 7
        %v1128 = vsub.s32 0, %v1127
        %v1129 = vrot.slane %v1119, %v1128
        %v1130 = vlaneseq
        %v1131 = vshrl.u32 %v1130, 7
        %v1132 = vsub.s32 0, %v1131
        %v1133 = vrot.slane %v1120, %v1132
        %v1134 = vlaneseq
        %v1135 = vshrl.u32 %v1134, 7
        %v1136 = vsub.s32 0, %v1135
        %v1137 = vrot.slane %v1121, %v1136
        %v1142 = vmul.f32 %v981, %v1125
        %v1143 = vmul.f32 %v982, %v1129
        %v1144 = vmul.f32 %v983, %v1133
        %v1145 = vmul.f32 %v984, %v1137
        %v1146 = vsel %vm322, %v1142, 0.0
        %v1147 = vsel %vm322, %v1143, 0.0
        %v1148 = vadd.f32 %v1146, %v1147
        %v1149 = vsel %vm322, %v1144, 0.0
        %v1150 = vadd.f32 %v1148, %v1149
        %v1151 = vsel %vm322, %v1145, 0.0
        %v1152 = vadd.f32 %v1150, %v1151
        %v1153 = vcombine.high %v471, %v471
        %v1155 = vunpack.c.l.s4 1966171168
        %v1156 = vunpack.c.0.s8 %v1155
        %v1157 = vlaneseq
        %v1158 = vshrl.u32 %v1157, 7
        %v1159 = vsub.s32 %v1156, %v1158
        %v1160 = vrot.slane %v1153, %v1159
        %v1161 = vcombine.high %v1160, %v1160
        %v1163 = vunpack.c.l.s4 1966171168
        %v1164 = vunpack.c.0.s8 %v1163
        %v1165 = vlaneseq
        %v1166 = vshrl.u32 %v1165, 7
        %v1167 = vsub.s32 %v1164, %v1166
        %v1168 = vrot.slane %v1160, %v1167
        %v1170 = vunpack.c.l.s4 1966171168
        %v1171 = vunpack.c.0.s8 %v1170
        %v1172 = vlaneseq
        %v1173 = vshrl.u32 %v1172, 7
        %v1174 = vsub.s32 %v1171, %v1173
        %v1175 = vrot.slane %v1161, %v1174
        %v1176 = vcombine.high %v1168, %v1168
        %v1177 = vcombine.high %v1175, %v1175
        %v1178 = vlaneseq
        %v1179 = vshrl.u32 %v1178, 7
        %v1180 = vsub.s32 0, %v1179
        %v1181 = vrot.slane %v1168, %v1180
        %v1182 = vlaneseq
        %v1183 = vshrl.u32 %v1182, 7
        %v1184 = vsub.s32 0, %v1183
        %v1185 = vrot.slane %v1175, %v1184
        %v1186 = vlaneseq
        %v1187 = vshrl.u32 %v1186, 7
        %v1188 = vsub.s32 0, %v1187
        %v1189 = vrot.slane %v1176, %v1188
        %v1190 = vlaneseq
        %v1191 = vshrl.u32 %v1190, 7
        %v1192 = vsub.s32 0, %v1191
        %v1193 = vrot.slane %v1177, %v1192
        %v1198 = vmul.f32 %v981, %v1181
        %v1199 = vmul.f32 %v982, %v1185
        %v1200 = vmul.f32 %v983, %v1189
        %v1201 = vmul.f32 %v984, %v1193
        %v1202 = vsel %vm322, %v1198, 0.0
        %v1203 = vsel %vm322, %v1199, 0.0
        %v1204 = vadd.f32 %v1202, %v1203
        %v1205 = vsel %vm322, %v1200, 0.0
        %v1206 = vadd.f32 %v1204, %v1205
        %v1207 = vsel %vm322, %v1201, 0.0
        %v1208 = vadd.f32 %v1206, %v1207
        %v1211 = vunpack.c.l.s4 1966171168
        %v1212 = vunpack.c.0.s8 %v1211
        %v1213 = vlaneseq
        %v1214 = vshrl.u32 %v1213, 7
        %v1215 = vsub.s32 %v1212, %v1214
        %v1216 = vrot.slane %v476, %v1215
        %v1217 = vcombine.high %v1216, %v1216
        %v1219 = vunpack.c.l.s4 1966171168
        %v1220 = vunpack.c.0.s8 %v1219
        %v1221 = vlaneseq
        %v1222 = vshrl.u32 %v1221, 7
        %v1223 = vsub.s32 %v1220, %v1222
        %v1224 = vrot.slane %v1216, %v1223
        %v1226 = vunpack.c.l.s4 1966171168
        %v1227 = vunpack.c.0.s8 %v1226
        %v1228 = vlaneseq
        %v1229 = vshrl.u32 %v1228, 7
        %v1230 = vsub.s32 %v1227, %v1229
        %v1231 = vrot.slane %v1217, %v1230
        %v1232 = vcombine.high %v1224, %v1224
        %v1233 = vcombine.high %v1231, %v1231
        %v1234 = vlaneseq
        %v1235 = vshrl.u32 %v1234, 7
        %v1236 = vsub.s32 0, %v1235
        %v1237 = vrot.slane %v1224, %v1236
        %v1238 = vlaneseq
        %v1239 = vshrl.u32 %v1238, 7
        %v1240 = vsub.s32 0, %v1239
        %v1241 = vrot.slane %v1231, %v1240
        %v1242 = vlaneseq
        %v1243 = vshrl.u32 %v1242, 7
        %v1244 = vsub.s32 0, %v1243
        %v1245 = vrot.slane %v1232, %v1244
        %v1246 = vlaneseq
        %v1247 = vshrl.u32 %v1246, 7
        %v1248 = vsub.s32 0, %v1247
        %v1249 = vrot.slane %v1233, %v1248
        %v1254 = vmul.f32 %v981, %v1237
        %v1255 = vmul.f32 %v982, %v1241
        %v1256 = vmul.f32 %v983, %v1245
        %v1257 = vmul.f32 %v984, %v1249
        %v1258 = vsel %vm322, %v1254, 0.0
        %v1259 = vsel %vm322, %v1255, 0.0
        %v1260 = vadd.f32 %v1258, %v1259
        %v1261 = vsel %vm322, %v1256, 0.0
        %v1262 = vadd.f32 %v1260, %v1261
        %v1263 = vsel %vm322, %v1257, 0.0
        %v1264 = vadd.f32 %v1262, %v1263
        %v1265 = vcombine.high %v476, %v476
        %v1267 = vunpack.c.l.s4 1966171168
        %v1268 = vunpack.c.0.s8 %v1267
        %v1269 = vlaneseq
        %v1270 = vshrl.u32 %v1269, 7
        %v1271 = vsub.s32 %v1268, %v1270
        %v1272 = vrot.slane %v1265, %v1271
        %v1273 = vcombine.high %v1272, %v1272
        %v1275 = vunpack.c.l.s4 1966171168
        %v1276 = vunpack.c.0.s8 %v1275
        %v1277 = vlaneseq
        %v1278 = vshrl.u32 %v1277, 7
        %v1279 = vsub.s32 %v1276, %v1278
        %v1280 = vrot.slane %v1272, %v1279
        %v1282 = vunpack.c.l.s4 1966171168
        %v1283 = vunpack.c.0.s8 %v1282
        %v1284 = vlaneseq
        %v1285 = vshrl.u32 %v1284, 7
        %v1286 = vsub.s32 %v1283, %v1285
        %v1287 = vrot.slane %v1273, %v1286
        %v1288 = vcombine.high %v1280, %v1280
        %v1289 = vcombine.high %v1287, %v1287
        %v1290 = vlaneseq
        %v1291 = vshrl.u32 %v1290, 7
        %v1292 = vsub.s32 0, %v1291
        %v1293 = vrot.slane %v1280, %v1292
        %v1294 = vlaneseq
        %v1295 = vshrl.u32 %v1294, 7
        %v1296 = vsub.s32 0, %v1295
        %v1297 = vrot.slane %v1287, %v1296
        %v1298 = vlaneseq
        %v1299 = vshrl.u32 %v1298, 7
        %v1300 = vsub.s32 0, %v1299
        %v1301 = vrot.slane %v1288, %v1300
        %v1302 = vlaneseq
        %v1303 = vshrl.u32 %v1302, 7
        %v1304 = vsub.s32 0, %v1303
        %v1305 = vrot.slane %v1289, %v1304
        %v1310 = vmul.f32 %v981, %v1293
        %v1311 = vmul.f32 %v982, %v1297
        %v1312 = vmul.f32 %v983, %v1301
        %v1313 = vmul.f32 %v984, %v1305
        %v1314 = vsel %vm322, %v1310, 0.0
        %v1315 = vsel %vm322, %v1311, 0.0
        %v1316 = vadd.f32 %v1314, %v1315
        %v1317 = vsel %vm322, %v1312, 0.0
        %v1318 = vadd.f32 %v1316, %v1317
        %v1319 = vsel %vm322, %v1313, 0.0
        %v1320 = vadd.f32 %v1318, %v1319
        %v1323 = vunpack.c.l.s4 1966171168
        %v1324 = vunpack.c.0.s8 %v1323
        %v1325 = vlaneseq
        %v1326 = vshrl.u32 %v1325, 7
        %v1327 = vsub.s32 %v1324, %v1326
        %v1328 = vrot.slane %v479, %v1327
        %v1329 = vcombine.high %v1328, %v1328
        %v1331 = vunpack.c.l.s4 1966171168
        %v1332 = vunpack.c.0.s8 %v1331
        %v1333 = vlaneseq
        %v1334 = vshrl.u32 %v1333, 7
        %v1335 = vsub.s32 %v1332, %v1334
        %v1336 = vrot.slane %v1328, %v1335
        %v1338 = vunpack.c.l.s4 1966171168
        %v1339 = vunpack.c.0.s8 %v1338
        %v1340 = vlaneseq
        %v1341 = vshrl.u32 %v1340, 7
        %v1342 = vsub.s32 %v1339, %v1341
        %v1343 = vrot.slane %v1329, %v1342
        %v1344 = vcombine.high %v1336, %v1336
        %v1345 = vcombine.high %v1343, %v1343
        %v1346 = vlaneseq
        %v1347 = vshrl.u32 %v1346, 7
        %v1348 = vsub.s32 0, %v1347
        %v1349 = vrot.slane %v1336, %v1348
        %v1350 = vlaneseq
        %v1351 = vshrl.u32 %v1350, 7
        %v1352 = vsub.s32 0, %v1351
        %v1353 = vrot.slane %v1343, %v1352
        %v1354 = vlaneseq
        %v1355 = vshrl.u32 %v1354, 7
        %v1356 = vsub.s32 0, %v1355
        %v1357 = vrot.slane %v1344, %v1356
        %v1358 = vlaneseq
        %v1359 = vshrl.u32 %v1358, 7
        %v1360 = vsub.s32 0, %v1359
        %v1361 = vrot.slane %v1345, %v1360
        %v1366 = vmul.f32 %v981, %v1349
        %v1367 = vmul.f32 %v982, %v1353
        %v1368 = vmul.f32 %v983, %v1357
        %v1369 = vmul.f32 %v984, %v1361
        %v1370 = vsel %vm322, %v1366, 0.0
        %v1371 = vsel %vm322, %v1367, 0.0
        %v1372 = vadd.f32 %v1370, %v1371
        %v1373 = vsel %vm322, %v1368, 0.0
        %v1374 = vadd.f32 %v1372, %v1373
        %v1375 = vsel %vm322, %v1369, 0.0
        %v1376 = vadd.f32 %v1374, %v1375
        %v1377 = vcombine.high %v479, %v479
        %v1379 = vunpack.c.l.s4 1966171168
        %v1380 = vunpack.c.0.s8 %v1379
        %v1381 = vlaneseq
        %v1382 = vshrl.u32 %v1381, 7
        %v1383 = vsub.s32 %v1380, %v1382
        %v1384 = vrot.slane %v1377, %v1383
        %v1385 = vcombine.high %v1384, %v1384
        %v1387 = vunpack.c.l.s4 1966171168
        %v1388 = vunpack.c.0.s8 %v1387
        %v1389 = vlaneseq
        %v1390 = vshrl.u32 %v1389, 7
        %v1391 = vsub.s32 %v1388, %v1390
        %v1392 = vrot.slane %v1384, %v1391
        %v1394 = vunpack.c.l.s4 1966171168
        %v1395 = vunpack.c.0.s8 %v1394
        %v1396 = vlaneseq
        %v1397 = vshrl.u32 %v1396, 7
        %v1398 = vsub.s32 %v1395, %v1397
        %v1399 = vrot.slane %v1385, %v1398
        %v1400 = vcombine.high %v1392, %v1392
        %v1401 = vcombine.high %v1399, %v1399
        %v1402 = vlaneseq
        %v1403 = vshrl.u32 %v1402, 7
        %v1404 = vsub.s32 0, %v1403
        %v1405 = vrot.slane %v1392, %v1404
        %v1406 = vlaneseq
        %v1407 = vshrl.u32 %v1406, 7
        %v1408 = vsub.s32 0, %v1407
        %v1409 = vrot.slane %v1399, %v1408
        %v1410 = vlaneseq
        %v1411 = vshrl.u32 %v1410, 7
        %v1412 = vsub.s32 0, %v1411
        %v1413 = vrot.slane %v1400, %v1412
        %v1414 = vlaneseq
        %v1415 = vshrl.u32 %v1414, 7
        %v1416 = vsub.s32 0, %v1415
        %v1417 = vrot.slane %v1401, %v1416
        %v1422 = vmul.f32 %v981, %v1405
        %v1423 = vmul.f32 %v982, %v1409
        %v1424 = vmul.f32 %v983, %v1413
        %v1425 = vmul.f32 %v984, %v1417
        %v1426 = vsel %vm322, %v1422, 0.0
        %v1427 = vsel %vm322, %v1423, 0.0
        %v1428 = vadd.f32 %v1426, %v1427
        %v1429 = vsel %vm322, %v1424, 0.0
        %v1430 = vadd.f32 %v1428, %v1429
        %v1431 = vsel %vm322, %v1425, 0.0
        %v1432 = vadd.f32 %v1430, %v1431
        %v1434 = vrot.slane %v1096, 4
        %v1437 = vrot.slane %v1208, 4
        %v1440 = vrot.slane %v1320, 4
        %v1443 = vrot.slane %v1432, 4
        %v1445 = vsel %vm322, %v1040, %v1434
        %v1446 = vsel %vm322, %v1152, %v1437
        %v1447 = vsel %vm322, %v1264, %v1440
        %v1448 = vsel %vm322, %v1376, %v1443
        %v1449 = vld [vmem:[%s3] sm:$0x3]
        %v1450 = vpack.c.bf16 %v1446, %v1445
        %v1451 = vpack.c.bf16 %v1448, %v1447
        %vm1452 = vcmask 261120
        %v1454 = vsel %vm1452, %v1449, 0
        %1456 = vmatprep.subr.bf16.mxu0 0
        %1457 = vmatpush1.bf16.msra.mxu0 0
        %1458 = vmatprep.subr.bf16.mxu0 0
        %1459 = vmatpush1.bf16.msra.mxu0 0
        %1460 = vmatprep.subr.bf16.mxu0 0
        %1461 = vmatpush1.bf16.msra.mxu0 0
        %1462 = vmatprep.subr.bf16.mxu0 0
        %1463 = vmatpush1.bf16.msra.mxu0 0
        %1464 = vmatprep.subr.bf16.mxu0 0
        %1465 = vmatpush1.bf16.msra.mxu0 0
        %1466 = vmatprep.subr.bf16.mxu0 0
        %1467 = vmatpush1.bf16.msra.mxu0 0
        %1468 = vmatprep.subr.bf16.mxu0 0
        %1469 = vmatpush1.bf16.msra.mxu0 %v1451
        %1470 = vmatprep.subr.bf16.mxu0 0
        %1471 = vmatpush1.bf16.msra.mxu0 %v1450
        %1472 = vmatprep.subr.bf16.mxu0 0
        %1473 = vmatpush2.bf16.msra.mxu0 0
        %1474 = vmatprep.subr.bf16.mxu0 0
        %1475 = vmatpush2.bf16.msra.mxu0 0
        %1476 = vmatprep.subr.bf16.mxu0 0
        %1477 = vmatpush2.bf16.msra.mxu0 0
        %1478 = vmatprep.subr.bf16.mxu0 0
        %1479 = vmatpush2.bf16.msra.mxu0 0
        %1480 = vmatprep.subr.bf16.mxu0 0
        %1481 = vmatpush2.bf16.msra.mxu0 0
        %1482 = vmatprep.subr.bf16.mxu0 0
        %1483 = vmatpush2.bf16.msra.mxu0 0
        %1484 = vmatprep.subr.bf16.mxu0 0
        %1485 = vmatpush2.bf16.msra.mxu0 0
        %1486 = vmatprep.subr.bf16.mxu0 0
        %1487 = vmatpush2.bf16.msra.mxu0 0
        %1488 = vmatprep.mubr.bf16.mxu0 0
        %1489 = vmatmul.mubr.bf16.gmra.mxu0 %v1454
        %v1490 = vpop.f32.mrf.mxu0
        %v1491 = vadd.f32 0.0, %v1490
        %v1492 = vpop.f32.mrf.mxu0
        %v1493 = vpop.f32.mrf.mxu0
        %v1494 = vpop.f32.mrf.mxu0
        %1495 = vdwg.mxu0
        %v1496 = vmax.f32 %v1491, 0.0
        %1497 = vst [vmem:[%s240] sm:$0xf] %v1496
        %s1498 = sand.u32 %s140, 1
        %s1499 = scalar_lea.sflag [#allocation3], %s1498
        %s1500 = sand.u32 %s140, 1
        %s1501 = smul.addr %s1500, 4
        %s1502 = scalar_lea.vmem [#allocation2], %s1501
        // Predicated region
        $region37: #{tpu_custom_call.1} parent=35 // pred_check
          %p1503 = pneg %p150
        $region38: #{tpu_custom_call.1} parent=35 // pred_check_branch
          %1505 = sbr.rel (%p1503) target = $region40
        $region39: #{tpu_custom_call.1} parent=35 // pred_region
          %s1507 = ssub.s32 64, 64
          %1508 = vsyncadd %s1499, %s1507
          %s1509 = smul.addr %s22, 3
          %s1510 = sadd.s32 %s23, %s1509
          %s1511 = smul.addr %s1510, 64
          %s1512 = scalar_lea.hbm %s4, %s1511
          %s1514 = sshll.u32 %s1502, 4
          %s1515 = int_to_ptr.vmem [resolvable:$true] %s1514
          %1517 = dma.vmem_to_hbm [thread:$0]  %s1515, 64, %s1512, %s1499
        $region40: #{tpu_custom_call.1} parent=35 // pred_fallthru
          _
      $region36: #{tpu_custom_call.1} parent=5 // pred_fallthru
        _
      %p1518 = scmp.le.s32.totalorder 2, %s13
      // Predicated region
      $region41: #{tpu_custom_call.1} parent=5 // pred_check
        %p1519 = pneg %p1518
      $region42: #{tpu_custom_call.1} parent=5 // pred_check_branch
        %1521 = sbr.rel (%p1519) target = $region44
      $region43: #{tpu_custom_call.1} parent=5 // pred_region
        %s1522 = ssub.s32 %s13, 2
        // Predicated region
        $region45: #{tpu_custom_call.1} parent=43 // pred_check
          %p1523 = pneg %p156
        $region46: #{tpu_custom_call.1} parent=43 // pred_check_branch
          %1525 = sbr.rel (%p1523) target = $region48
        $region47: #{tpu_custom_call.1} parent=43 // pred_region
          %s1526 = sand.u32 %s141, 1
          %s1527 = scalar_lea.sflag [#allocation3], %s1526
          %s1528 = sand.u32 %s141, 1
          %s1529 = smul.addr %s1528, 4
          %s1530 = scalar_lea.vmem [#allocation2], %s1529
          %1531 = dma.done %s1527, 64
        $region48: #{tpu_custom_call.1} parent=43 // pred_fallthru
          _
      $region44: #{tpu_custom_call.1} parent=5 // pred_fallthru
        _
    $region6: #{tpu_custom_call.1} parent=1 // loop_footer
      %s17 = sadd.s32 1, %s13
    $region7: #{tpu_custom_call.1} parent=1 // loop_footer_branch
      %12 = sbr.rel target = $region3
    $region8: #{tpu_custom_call.1} parent=1 // loop_exit
      _
    %1532 = vsyncpa [#allocation3], 1
    %s1533 = scalar_lea.sflag [#allocation3], 1
    %1534 = vsyncpa %s1533, 1

</llo_original>
